<compile_context>
chip_gen: v6e
topology: v6e:2x2x1
jax: 0.10.0
libtpu: 0.0.40
codegen_flags: <defaults>
</compile_context>

<pallas_src>
import functools
from collections import OrderedDict

import numpy as np
import jax
import jax.numpy as jnp
from jax import lax
from jax.experimental import pallas as pl
from jax.experimental.pallas import tpu as pltpu

_EPS = 1e-6
_LANE = 128
_NSTAT = 27
_NUM_INPUTS = 12
_SUB = 8                        # accumulator sublane rows (one f32 vreg)
_TARGET_BLOCK_ROWS = 1024       # ~512 KiB / f32 input / pipeline buffer


# ---------------------------------------------------------------------------
# Shared per-element statistics (used both inside the kernel and for the tiny
# XLA tail path) — guarantees identical math on both paths.
# ---------------------------------------------------------------------------
def _per_element_stats(vals, *, px_threshold, max_disp):
    (disp1, occ1m, gres1, dprd1, oprd1,
     disp2, occ2m, gres2, dprd2, oprd2, dc_p, dc_g) = vals
    f32 = lambda b: b.astype(jnp.float32)

    def valid_of(d):
        v = d > 0.0
        if max_disp > 0.0:
            v = v & (d < max_disp)
        return v

    occ1 = occ1m > 0.5
    occ2 = occ2m > 0.5
    valid1 = valid_of(disp1)
    valid2 = valid_of(disp2)          # inputs2 mask is used for ALL metrics
    mv, mvf = valid2, f32(valid2)

    parts = []

    def timestep(disp, occ, gres, dprd, oprd, valid):
        vf, of = f32(valid), f32(occ)
        rr = -jnp.log(gres + _EPS)
        d = dprd - disp
        ad = jnp.abs(d)
        sl1 = jnp.where(ad < 1.0, 0.5 * d * d, ad - 0.5)      # SmoothL1, beta=1
        be_occ = -jnp.log(oprd + _EPS)
        be_noc = -jnp.log(1.0 - oprd + _EPS)
        pm = oprd > 0.5
        parts.extend([
            vf * rr,                                  # +0  rr numerator
            vf,                                       # +1  valid count
            vf * sl1,                                 # +2  smooth-l1 numerator
            of * be_occ,                              # +3  occ BE numerator
            of,                                       # +4  occ count
            vf * be_noc,                              # +5  non-occ BE numerator
            mvf * f32(ad > px_threshold),             # +6  px-error count
            mvf * ad,                                 # +7  epe numerator
            f32(pm & occ),                            # +8  inter_occ
            f32((pm & mv) | occ),                     # +9  union_occ
            f32((~pm) & mv),                          # +10 inter_noc
            f32(((~pm) & occ) | mv),                  # +11 union_noc
        ])

    timestep(disp1, occ1, gres1, dprd1, oprd1, valid1)
    timestep(disp2, occ2, gres2, dprd2, oprd2, valid2)

    dd = dc_p - dc_g
    add = jnp.abs(dd)
    parts.extend([
        mvf * f32(add > px_threshold),                        # 24 dc px error
        add,                                                  # 25 dc epe numerator
        jnp.where(add < 1.0, 0.5 * dd * dd, add - 0.5),       # 26 dc smooth-l1
    ])
    assert len(parts) == _NSTAT
    return parts


# ---------------------------------------------------------------------------
# Pallas kernel: one grid step = one full (block_rows, 128) block per input.
# Strip-wise fori_loop keeps 27 (8,128) f32 accumulators in vregs and writes
# the resident output block once per grid step.
# ---------------------------------------------------------------------------
def _loss_stats_kernel(*refs, px_threshold, max_disp, strip_rows, strips_per_block):
    in_refs = refs[:_NUM_INPUTS]
    out_ref = refs[_NUM_INPUTS]

    @pl.when(pl.program_id(1) == 0)
    def _init():
        out_ref[...] = jnp.zeros_like(out_ref)

    fold = strip_rows // _SUB     # 1 for pure-f32 inputs, 2 when bf16 present

    def body(s, accs):
        r0 = pl.multiple_of(s * strip_rows, strip_rows)
        vals = [r[pl.ds(r0, strip_rows), :].astype(jnp.float32) for r in in_refs]
        parts = _per_element_stats(vals, px_threshold=px_threshold,
                                   max_disp=max_disp)
        if fold > 1:
            parts = [p.reshape(fold, _SUB, _LANE).sum(axis=0) for p in parts]
        return tuple(a + p for a, p in zip(accs, parts))

    init = tuple(jnp.zeros((_SUB, _LANE), jnp.float32) for _ in range(_NSTAT))
    accs = lax.fori_loop(0, strips_per_block, body, init)

    out_ref[...] += jnp.stack(accs)[None]


def _compute_stats(d1, m1, g1, p1, q1, d2, m2, g2, p2, q2, cp, cg,
                   *, px_threshold, max_disp):
    """Returns (kernel partials (cores, 27, 8, 128), tail stats (27,))."""
    arrs = [d1, m1, g1, p1, q1, d2, m2, g2, p2, q2, cp, cg]
    shape = tuple(d1.shape)
    for a in arrs:
        assert tuple(a.shape) == shape, "all per-pixel maps must share a shape"
    n = int(np.prod(shape))

    # Native dtypes stream into the kernel; only 8-bit / bool maps are widened
    # (to bf16, still 2x smaller than f32) so strip slices respect tiling.
    def prep(a):
        if a.dtype.itemsize == 1:
            a = a.astype(jnp.bfloat16)
        elif a.dtype.itemsize == 8:
            a = a.astype(jnp.float32)
        return a.reshape(-1)

    flats = [prep(a) for a in arrs]
    strip = 16 if any(f.dtype.itemsize == 2 for f in flats) else _SUB

    nrows = n // _LANE
    num_cores = 2 if nrows >= 2 * strip else 1
    blocks_total = max(num_cores, -(-nrows // _TARGET_BLOCK_ROWS)) if nrows else 1
    blocks_total = -(-blocks_total // num_cores) * num_cores
    block_rows = ((nrows // blocks_total) // strip) * strip if nrows else 0

    if block_rows >= strip:
        blocks_per_core = blocks_total // num_cores
        rows_kernel = num_cores * blocks_per_core * block_rows
    else:
        blocks_per_core = 0
        rows_kernel = 0
    n_kernel = rows_kernel * _LANE

    if rows_kernel > 0:
        if n % _LANE == 0:
            # Free lane-dense view; the grid simply never touches rows beyond
            # rows_kernel (they are handled by the XLA tail below).
            main = [f.reshape(nrows, _LANE) for f in flats]
        else:
            # Ragged element count: one extra XLA pass builds the dense slab.
            main = [f[:n_kernel].reshape(rows_kernel, _LANE) for f in flats]

        kernel = functools.partial(
            _loss_stats_kernel,
            px_threshold=float(px_threshold),
            max_disp=float(max_disp),
            strip_rows=strip,
            strips_per_block=block_rows // strip)

        def in_map(c, i):
            return (c * blocks_per_core + i, 0)

        out = pl.pallas_call(
            kernel,
            out_shape=jax.ShapeDtypeStruct((num_cores, _NSTAT, _SUB, _LANE),
                                           jnp.float32),
            grid_spec=pltpu.PrefetchScalarGridSpec(
                num_scalar_prefetch=0,
                grid=(num_cores, blocks_per_core),
                in_specs=[pl.BlockSpec((block_rows, _LANE), in_map)] * _NUM_INPUTS,
                out_specs=pl.BlockSpec((1, _NSTAT, _SUB, _LANE),
                                       lambda c, i: (c, 0, 0, 0))),
            compiler_params=pltpu.CompilerParams(
                dimension_semantics=("parallel", "arbitrary"),
                vmem_limit_bytes=32 * 1024 * 1024),
        )(*main)
    else:
        out = jnp.zeros((1, _NSTAT, _SUB, _LANE), jnp.float32)

    # Remainder (rows not covered by full kernel blocks + ragged lane tail):
    # tiny, reduced with fused XLA inside the same jit — identical math.
    if n_kernel < n:
        tail_vals = [f[n_kernel:].astype(jnp.float32) for f in flats]
        tail_parts = _per_element_stats(tail_vals,
                                        px_threshold=float(px_threshold),
                                        max_disp=float(max_disp))
        tail = jnp.stack([p.sum() for p in tail_parts])
    else:
        tail = jnp.zeros((_NSTAT,), jnp.float32)
    return out, tail


class NestedTensor:
    def __init__(self, disp, occ_mask, sampled_cols=None, sampled_rows=None):
        self.disp = disp
        self.occ_mask = occ_mask
        self.sampled_cols = sampled_cols
        self.sampled_rows = sampled_rows


class CriterionPallas:
    """Pallas-TPU port of the PyTorch `Criterion` forward pass."""

    def __init__(self, threshold=3, validation_max_disp=-1, loss_weight=None):
        if loss_weight is None:
            loss_weight = {}
        self.px_threshold = threshold
        self.validation_max_disp = validation_max_disp
        self.weights = loss_weight
        self._stats_fn = jax.jit(functools.partial(
            _compute_stats,
            px_threshold=float(threshold),
            max_disp=float(validation_max_disp)))

    def __call__(self, inputs1, inputs2, disp_change, outputs):
        # TODO(synk): sampled_cols / sampled_rows and the optional ragged
        # 'gt_response_occ_left' / 'gt_response_occ_right' outputs unsupported.
        o1, o2 = outputs['out_t1'], outputs['out_t2']
        out, tail = self._stats_fn(
            inputs1.disp, inputs1.occ_mask,
            o1['gt_response'], o1['disp_pred'], o1['occ_pred'],
            inputs2.disp, inputs2.occ_mask,
            o2['gt_response'], o2['disp_pred'], o2['occ_pred'],
            outputs['disp_change'], disp_change)
        jax.block_until_ready(out)
        jax.block_until_ready(tail)
        # Final reduction in float64 on host (exact for very large pixel counts).
        s = (np.asarray(out).astype(np.float64).sum(axis=(0, 2, 3))
             + np.asarray(tail).astype(np.float64))

        if s[1] == 0.0 or s[13] == 0.0:     # torch.all(invalid_mask) for t1 / t2
            return None

        n_total = float(np.prod(np.asarray(inputs1.disp.shape)))
        mv_total = s[13]                    # sum(~invalid_mask) from inputs2

        def group_losses(g):
            ld = OrderedDict()
            ld['rr'] = g[0] / g[1]
            l1 = g[2] / g[1]
            ld['l1_raw'] = l1
            ld['l1'] = l1
            ld['occ_be'] = (g[3] + g[5]) / (g[4] + g[1])
            agg = 0.0
            for key in list(ld.keys()):     # aggregate_loss over present keys
                agg += ld[key] * self.weights[key]
            ld['aggregated'] = agg
            # metrics: inputs2-derived invalid mask (as in the original forward)
            ld['error_px'] = int(round(g[6]))
            ld['total_px'] = int(round(mv_total))
            ld['epe'] = g[7] / mv_total
            ld['iou'] = (g[8] + g[10]) / (g[9] + g[11])
            return ld

        loss1 = group_losses(s[0:12])
        loss2 = group_losses(s[12:24])

        dc = OrderedDict()
        dc['px_error'] = int(round(s[24]))
        dc['total_px'] = int(round(mv_total))
        dc['epe'] = s[25] / n_total         # nn.L1Loss over ALL pixels
        dc['l1'] = s[26] / n_total          # nn.SmoothL1Loss over ALL pixels

        loss = OrderedDict()
        loss['disp_change'] = dc
        loss['loss1'] = loss1
        loss['loss2'] = loss2
        loss['aggregated'] = loss1['aggregated'] + loss2['aggregated'] + dc['l1']
        return loss


# ----------------------------------------------------------------------------
# Pure NumPy (float64) reference of the PyTorch forward, for self-checking.
# ----------------------------------------------------------------------------
def _npf(x):
    return np.asarray(jnp.asarray(x, jnp.float32)).astype(np.float64)


def _reference_forward(inputs1, inputs2, disp_change, outputs, weights, thr, max_disp):
    eps = 1e-6

    def inv_of(d):
        if max_disp == -1:
            return d <= 0.0
        return (d <= 0.0) | (d >= max_disp)

    def sl1(d):
        ad = np.abs(d)
        return np.where(ad < 1.0, 0.5 * d * d, ad - 0.5)

    d1, oc1 = _npf(inputs1.disp), _npf(inputs1.occ_mask) > 0.5
    d2, oc2 = _npf(inputs2.disp), _npf(inputs2.occ_mask) > 0.5
    o1 = {k: _npf(v) for k, v in outputs['out_t1'].items()}
    o2 = {k: _npf(v) for k, v in outputs['out_t2'].items()}
    dcp, dcg = _npf(outputs['disp_change']), _npf(disp_change)

    inv1, inv2 = inv_of(d1), inv_of(d2)
    if inv1.all() or inv2.all():
        return None

    def losses(disp, occ, out, inv):
        valid = ~inv
        ld = OrderedDict()
        ld['rr'] = (-np.log(out['gt_response'] + eps))[valid].mean()
        l1 = sl1(out['disp_pred'] - disp)[valid].mean()
        ld['l1_raw'] = l1
        ld['l1'] = l1
        num = ((-np.log(out['occ_pred'] + eps))[occ].sum() +
               (-np.log(1.0 - out['occ_pred'] + eps))[valid].sum())
        ld['occ_be'] = num / (occ.sum() + valid.sum())
        ld['aggregated'] = sum(ld[k] * weights[k]
                               for k in ('rr', 'l1_raw', 'l1', 'occ_be'))
        return ld

    loss1 = losses(d1, oc1, o1, inv1)
    loss2 = losses(d2, oc2, o2, inv2)

    def metrics(disp, occ, out, ld):
        valid = ~inv2                        # overwritten invalid_mask (inputs2)
        ad = np.abs(out['disp_pred'] - disp)
        ld['error_px'] = int((ad[valid] > thr).sum())
        ld['total_px'] = int(valid.sum())
        ld['epe'] = ad[valid].mean()
        pm = out['occ_pred'] > 0.5
        inter_occ = (pm & occ).sum()
        union_occ = ((pm & valid) | occ).sum()
        inter_noc = ((~pm) & valid).sum()
        union_noc = (((~pm) & occ) | valid).sum()
        ld['iou'] = float(inter_occ + inter_noc) / float(union_occ + union_noc)

    metrics(d1, oc1, o1, loss1)
    metrics(d2, oc2, o2, loss2)

    valid2 = ~inv2
    dc_d = dcp - dcg
    dc = OrderedDict()
    dc['px_error'] = int((np.abs(dc_d)[valid2] > thr).sum())
    dc['total_px'] = int(valid2.sum())
    dc['epe'] = np.abs(dc_d).mean()
    dc['l1'] = sl1(dc_d).mean()

    ref = OrderedDict()
    ref['disp_change'] = dc
    ref['loss1'] = loss1
    ref['loss2'] = loss2
    ref['aggregated'] = loss1['aggregated'] + loss2['aggregated'] + dc['l1']
    return ref


def _assert_close(a, b, name, tol=2e-3):
    a, b = float(a), float(b)
    assert abs(a - b) <= tol * (abs(b) + 1.0), f"{name}: {a} vs {b}"


def _check_case(key, N, H, W, validation_max_disp, weights, thr,
                pred_dtype=jnp.float32, bool_masks=False):
    ks = jax.random.split(key, 14)
    shape = (N, H, W)

    def u(k, lo, hi):
        return jax.random.uniform(k, shape, jnp.float32, lo, hi)

    disp1 = jnp.where(jax.random.uniform(ks[0], shape) < 0.25, 0.0, u(ks[1], 1.0, 17.0))
    disp2 = jnp.where(jax.random.uniform(ks[2], shape) < 0.25, 0.0, u(ks[3], 1.0, 17.0))
    occ1 = jax.random.uniform(ks[4], shape) < 0.15
    occ2 = jax.random.uniform(ks[5], shape) < 0.15
    if not bool_masks:
        occ1 = occ1.astype(jnp.float32)
        occ2 = occ2.astype(jnp.float32)
    dc_gt = u(ks[6], -2.0, 2.0)
    cast = lambda x: x.astype(pred_dtype)
    outputs = {
        'out_t1': {
            'gt_response': cast(jax.nn.sigmoid(jax.random.normal(ks[7], shape))),
            'disp_pred': cast(disp1 + 2.0 * jax.random.normal(ks[8], shape)),
            'occ_pred': cast(jax.nn.sigmoid(jax.random.normal(ks[9], shape))),
        },
        'out_t2': {
            'gt_response': cast(jax.nn.sigmoid(jax.random.normal(ks[10], shape))),
            'disp_pred': cast(disp2 + 2.0 * jax.random.normal(ks[11], shape)),
            'occ_pred': cast(jax.nn.sigmoid(jax.random.normal(ks[12], shape))),
        },
        'disp_change': cast(dc_gt + 1.5 * jax.random.normal(ks[13], shape)),
    }
    inputs1 = NestedTensor(disp1, occ1)
    inputs2 = NestedTensor(disp2, occ2)

    criterion = CriterionPallas(threshold=thr,
                                validation_max_disp=validation_max_disp,
                                loss_weight=weights)
    loss = criterion(inputs1, inputs2, dc_gt, outputs)
    assert loss is not None
    jax.block_until_ready(jnp.float32(loss['aggregated']))

    ref = _reference_forward(inputs1, inputs2, dc_gt, outputs, weights, thr,
                             validation_max_disp)
    _assert_close(loss['aggregated'], ref['aggregated'], 'aggregated')
    for t in ('loss1', 'loss2'):
        for k in ('rr', 'l1_raw', 'l1', 'occ_be', 'aggregated', 'epe', 'iou'):
            _assert_close(loss[t][k], ref[t][k], f"{t}.{k}")
        assert loss[t]['error_px'] == ref[t]['error_px'], f"{t}.error_px"
        assert loss[t]['total_px'] == ref[t]['total_px'], f"{t}.total_px"
    for k in ('epe', 'l1'):
        _assert_close(loss['disp_change'][k], ref['disp_change'][k], f"dc.{k}")
    assert loss['disp_change']['px_error'] == ref['disp_change']['px_error']
    assert loss['disp_change']['total_px'] == ref['disp_change']['total_px']


if __name__ == "__main__":
    key = jax.random.PRNGKey(0)
    k1, k2, k3 = jax.random.split(key, 3)
    weights = {'rr': 1.0, 'l1_raw': 0.5, 'l1': 1.0, 'occ_be': 0.3}
    # Lane-dense free view, exact 2-way block split, no XLA tail.
    _check_case(k1, N=2, H=32, W=64, validation_max_disp=-1, weights=weights, thr=3)
    # Ragged element count: lane-dense main slab + small XLA tail, max-disp mask.
    _check_case(k2, N=2, H=37, W=43, validation_max_disp=10, weights=weights, thr=3)
    # Native bf16 predictions + bool occlusion masks (16-row strips in-kernel).
    _check_case(k3, N=2, H=48, W=64, validation_max_disp=-1, weights=weights, thr=3,
                pred_dtype=jnp.bfloat16, bool_masks=True)
    print("KERNEL_OK")
</pallas_src>

<mosaic_0001>
module attributes {stable_mosaic.version = 11 : i64} {
  func.func @_loss_stats_kernel(%arg0: i32, %arg1: i32, %arg2: memref<16x128xf32, #tpu.memory_space<vmem>>, %arg3: memref<16x128xf32, #tpu.memory_space<vmem>>, %arg4: memref<16x128xf32, #tpu.memory_space<vmem>>, %arg5: memref<16x128xf32, #tpu.memory_space<vmem>>, %arg6: memref<16x128xf32, #tpu.memory_space<vmem>>, %arg7: memref<16x128xf32, #tpu.memory_space<vmem>>, %arg8: memref<16x128xf32, #tpu.memory_space<vmem>>, %arg9: memref<16x128xf32, #tpu.memory_space<vmem>>, %arg10: memref<16x128xf32, #tpu.memory_space<vmem>>, %arg11: memref<16x128xf32, #tpu.memory_space<vmem>>, %arg12: memref<16x128xf32, #tpu.memory_space<vmem>>, %arg13: memref<16x128xf32, #tpu.memory_space<vmem>>, %arg14: memref<1x27x8x128xf32, #tpu.memory_space<vmem>>) attributes {dimension_semantics = [#tpu.dimension_semantics<parallel>, #tpu.dimension_semantics<arbitrary>], iteration_bounds = array<i64: 2, 1>, scalar_prefetch = 0 : i64, scratch_operands = 0 : i64, tpu.core_type = #tpu.core_type<tc>, window_params = [{transform_indices = @transform_0, window_bounds = array<i64: 16, 128>}, {transform_indices = @transform_1, window_bounds = array<i64: 16, 128>}, {transform_indices = @transform_2, window_bounds = array<i64: 16, 128>}, {transform_indices = @transform_3, window_bounds = array<i64: 16, 128>}, {transform_indices = @transform_4, window_bounds = array<i64: 16, 128>}, {transform_indices = @transform_5, window_bounds = array<i64: 16, 128>}, {transform_indices = @transform_6, window_bounds = array<i64: 16, 128>}, {transform_indices = @transform_7, window_bounds = array<i64: 16, 128>}, {transform_indices = @transform_8, window_bounds = array<i64: 16, 128>}, {transform_indices = @transform_9, window_bounds = array<i64: 16, 128>}, {transform_indices = @transform_10, window_bounds = array<i64: 16, 128>}, {transform_indices = @transform_11, window_bounds = array<i64: 16, 128>}, {transform_indices = @transform_12, window_bounds = array<i64: 1, 27, 8, 128>}]} {
    %c0_i32 = arith.constant 0 : i32
    %0 = arith.cmpi eq, %arg1, %c0_i32 : i32
    %1 = arith.extui %0 : i1 to i32
    %c0_i32_0 = arith.constant 0 : i32
    %2 = arith.cmpi ne, %1, %c0_i32_0 : i32
    scf.if %2 {
      %cst_36 = arith.constant 0.000000e+00 : f32
      %66 = vector.broadcast %cst_36 : f32 to vector<1x27x8x128xf32>
      %c0_37 = arith.constant 0 : index
      %c0_38 = arith.constant 0 : index
      %c0_39 = arith.constant 0 : index
      %c0_40 = arith.constant 0 : index
      %67 = vector.load %arg14[%c0_37, %c0_38, %c0_39, %c0_40] : memref<1x27x8x128xf32, #tpu.memory_space<vmem>>, vector<1x27x8x128xf32>
      tpu.vector_store %arg14[%c0_37, %c0_38, %c0_39, %c0_40], %66 {strides = array<i32>} : memref<1x27x8x128xf32, #tpu.memory_space<vmem>>, vector<1x27x8x128xf32>,
    } else {
    }
    %cst = arith.constant 0.000000e+00 : f32
    %3 = vector.broadcast %cst : f32 to vector<8x128xf32>
    %cst_1 = arith.constant 0.000000e+00 : f32
    %4 = vector.broadcast %cst_1 : f32 to vector<8x128xf32>
    %cst_2 = arith.constant 0.000000e+00 : f32
    %5 = vector.broadcast %cst_2 : f32 to vector<8x128xf32>
    %cst_3 = arith.constant 0.000000e+00 : f32
    %6 = vector.broadcast %cst_3 : f32 to vector<8x128xf32>
    %cst_4 = arith.constant 0.000000e+00 : f32
    %7 = vector.broadcast %cst_4 : f32 to vector<8x128xf32>
    %cst_5 = arith.constant 0.000000e+00 : f32
    %8 = vector.broadcast %cst_5 : f32 to vector<8x128xf32>
    %cst_6 = arith.constant 0.000000e+00 : f32
    %9 = vector.broadcast %cst_6 : f32 to vector<8x128xf32>
    %cst_7 = arith.constant 0.000000e+00 : f32
    %10 = vector.broadcast %cst_7 : f32 to vector<8x128xf32>
    %cst_8 = arith.constant 0.000000e+00 : f32
    %11 = vector.broadcast %cst_8 : f32 to vector<8x128xf32>
    %cst_9 = arith.constant 0.000000e+00 : f32
    %12 = vector.broadcast %cst_9 : f32 to vector<8x128xf32>
    %cst_10 = arith.constant 0.000000e+00 : f32
    %13 = vector.broadcast %cst_10 : f32 to vector<8x128xf32>
    %cst_11 = arith.constant 0.000000e+00 : f32
    %14 = vector.broadcast %cst_11 : f32 to vector<8x128xf32>
    %cst_12 = arith.constant 0.000000e+00 : f32
    %15 = vector.broadcast %cst_12 : f32 to vector<8x128xf32>
    %cst_13 = arith.constant 0.000000e+00 : f32
    %16 = vector.broadcast %cst_13 : f32 to vector<8x128xf32>
    %cst_14 = arith.constant 0.000000e+00 : f32
    %17 = vector.broadcast %cst_14 : f32 to vector<8x128xf32>
    %cst_15 = arith.constant 0.000000e+00 : f32
    %18 = vector.broadcast %cst_15 : f32 to vector<8x128xf32>
    %cst_16 = arith.constant 0.000000e+00 : f32
    %19 = vector.broadcast %cst_16 : f32 to vector<8x128xf32>
    %cst_17 = arith.constant 0.000000e+00 : f32
    %20 = vector.broadcast %cst_17 : f32 to vector<8x128xf32>
    %cst_18 = arith.constant 0.000000e+00 : f32
    %21 = vector.broadcast %cst_18 : f32 to vector<8x128xf32>
    %cst_19 = arith.constant 0.000000e+00 : f32
    %22 = vector.broadcast %cst_19 : f32 to vector<8x128xf32>
    %cst_20 = arith.constant 0.000000e+00 : f32
    %23 = vector.broadcast %cst_20 : f32 to vector<8x128xf32>
    %cst_21 = arith.constant 0.000000e+00 : f32
    %24 = vector.broadcast %cst_21 : f32 to vector<8x128xf32>
    %cst_22 = arith.constant 0.000000e+00 : f32
    %25 = vector.broadcast %cst_22 : f32 to vector<8x128xf32>
    %cst_23 = arith.constant 0.000000e+00 : f32
    %26 = vector.broadcast %cst_23 : f32 to vector<8x128xf32>
    %cst_24 = arith.constant 0.000000e+00 : f32
    %27 = vector.broadcast %cst_24 : f32 to vector<8x128xf32>
    %cst_25 = arith.constant 0.000000e+00 : f32
    %28 = vector.broadcast %cst_25 : f32 to vector<8x128xf32>
    %cst_26 = arith.constant 0.000000e+00 : f32
    %29 = vector.broadcast %cst_26 : f32 to vector<8x128xf32>
    %c0_i32_27 = arith.constant 0 : i32
    %c2_i32 = arith.constant 2 : i32
    %30 = arith.addi %c0_i32_27, %c2_i32 : i32
    %c1_i32 = arith.constant 1 : i32
    %31:27 = scf.for %arg15 = %c0_i32_27 to %30 step %c1_i32 iter_args(%arg16 = %3, %arg17 = %4, %arg18 = %5, %arg19 = %6, %arg20 = %7, %arg21 = %8, %arg22 = %9, %arg23 = %10, %arg24 = %11, %arg25 = %12, %arg26 = %13, %arg27 = %14, %arg28 = %15, %arg29 = %16, %arg30 = %17, %arg31 = %18, %arg32 = %19, %arg33 = %20, %arg34 = %21, %arg35 = %22, %arg36 = %23, %arg37 = %24, %arg38 = %25, %arg39 = %26, %arg40 = %27, %arg41 = %28, %arg42 = %29) -> (vector<8x128xf32>, vector<8x128xf32>, vector<8x128xf32>, vector<8x128xf32>, vector<8x128xf32>, vector<8x128xf32>, vector<8x128xf32>, vector<8x128xf32>, vector<8x128xf32>, vector<8x128xf32>, vector<8x128xf32>, vector<8x128xf32>, vector<8x128xf32>, vector<8x128xf32>, vector<8x128xf32>, vector<8x128xf32>, vector<8x128xf32>, vector<8x128xf32>, vector<8x128xf32>, vector<8x128xf32>, vector<8x128xf32>, vector<8x128xf32>, vector<8x128xf32>, vector<8x128xf32>, vector<8x128xf32>, vector<8x128xf32>, vector<8x128xf32>)  : i32 {
      %c8_i32 = arith.constant 8 : i32
      %66 = arith.muli %arg15, %c8_i32 : i32
      %67 = tpu.assume_multiple %66, 8 : i32
      %68 = arith.index_cast %67 : i32 to index
      %c0_36 = arith.constant 0 : index
      %69 = vector.load %arg2[%68, %c0_36] : memref<16x128xf32, #tpu.memory_space<vmem>>, vector<8x128xf32>
      %70 = arith.index_cast %67 : i32 to index
      %c0_37 = arith.constant 0 : index
      %71 = vector.load %arg3[%70, %c0_37] : memref<16x128xf32, #tpu.memory_space<vmem>>, vector<8x128xf32>
      %72 = arith.index_cast %67 : i32 to index
      %c0_38 = arith.constant 0 : index
      %73 = vector.load %arg4[%72, %c0_38] : memref<16x128xf32, #tpu.memory_space<vmem>>, vector<8x128xf32>
      %74 = arith.index_cast %67 : i32 to index
      %c0_39 = arith.constant 0 : index
      %75 = vector.load %arg5[%74, %c0_39] : memref<16x128xf32, #tpu.memory_space<vmem>>, vector<8x128xf32>
      %76 = arith.index_cast %67 : i32 to index
      %c0_40 = arith.constant 0 : index
      %77 = vector.load %arg6[%76, %c0_40] : memref<16x128xf32, #tpu.memory_space<vmem>>, vector<8x128xf32>
      %78 = arith.index_cast %67 : i32 to index
      %c0_41 = arith.constant 0 : index
      %79 = vector.load %arg7[%78, %c0_41] : memref<16x128xf32, #tpu.memory_space<vmem>>, vector<8x128xf32>
      %80 = arith.index_cast %67 : i32 to index
      %c0_42 = arith.constant 0 : index
      %81 = vector.load %arg8[%80, %c0_42] : memref<16x128xf32, #tpu.memory_space<vmem>>, vector<8x128xf32>
      %82 = arith.index_cast %67 : i32 to index
      %c0_43 = arith.constant 0 : index
      %83 = vector.load %arg9[%82, %c0_43] : memref<16x128xf32, #tpu.memory_space<vmem>>, vector<8x128xf32>
      %84 = arith.index_cast %67 : i32 to index
      %c0_44 = arith.constant 0 : index
      %85 = vector.load %arg10[%84, %c0_44] : memref<16x128xf32, #tpu.memory_space<vmem>>, vector<8x128xf32>
      %86 = arith.index_cast %67 : i32 to index
      %c0_45 = arith.constant 0 : index
      %87 = vector.load %arg11[%86, %c0_45] : memref<16x128xf32, #tpu.memory_space<vmem>>, vector<8x128xf32>
      %88 = arith.index_cast %67 : i32 to index
      %c0_46 = arith.constant 0 : index
      %89 = vector.load %arg12[%88, %c0_46] : memref<16x128xf32, #tpu.memory_space<vmem>>, vector<8x128xf32>
      %90 = arith.index_cast %67 : i32 to index
      %c0_47 = arith.constant 0 : index
      %91 = vector.load %arg13[%90, %c0_47] : memref<16x128xf32, #tpu.memory_space<vmem>>, vector<8x128xf32>
      %cst_48 = arith.constant 5.000000e-01 : f32
      %92 = vector.broadcast %cst_48 : f32 to vector<8x128xf32>
      %93 = arith.cmpf ogt, %71, %92 : vector<8x128xf32>
      %cst_49 = arith.constant 5.000000e-01 : f32
      %94 = vector.broadcast %cst_49 : f32 to vector<8x128xf32>
      %95 = arith.cmpf ogt, %81, %94 : vector<8x128xf32>
      %cst_50 = arith.constant 0.000000e+00 : f32
      %96 = vector.broadcast %cst_50 : f32 to vector<8x128xf32>
      %97 = arith.cmpf ogt, %69, %96 : vector<8x128xf32>
      %cst_51 = arith.constant 0.000000e+00 : f32
      %98 = vector.broadcast %cst_51 : f32 to vector<8x128xf32>
      %99 = arith.cmpf ogt, %79, %98 : vector<8x128xf32>
      %100 = arith.extui %99 : vector<8x128xi1> to vector<8x128xi32>
      %101 = arith.sitofp %100 : vector<8x128xi32> to vector<8x128xf32>
      %102 = arith.extui %97 : vector<8x128xi1> to vector<8x128xi32>
      %103 = arith.sitofp %102 : vector<8x128xi32> to vector<8x128xf32>
      %104 = arith.extui %93 : vector<8x128xi1> to vector<8x128xi32>
      %105 = arith.sitofp %104 : vector<8x128xi32> to vector<8x128xf32>
      %cst_52 = arith.constant 9.99999997E-7 : f32
      %106 = vector.broadcast %cst_52 : f32 to vector<8x128xf32>
      %107 = arith.addf %73, %106 : vector<8x128xf32>
      %108 = math.log %107 : vector<8x128xf32>
      %cst_53 = arith.constant 0.000000e+00 : f32
      %109 = vector.broadcast %cst_53 : f32 to vector<8x128xf32>
      %110 = arith.subf %109, %108 : vector<8x128xf32>
      %111 = arith.subf %75, %69 : vector<8x128xf32>
      %112 = math.absf %111 : vector<8x128xf32>
      %cst_54 = arith.constant 1.000000e+00 : f32
      %113 = vector.broadcast %cst_54 : f32 to vector<8x128xf32>
      %114 = arith.cmpf olt, %112, %113 : vector<8x128xf32>
      %cst_55 = arith.constant 5.000000e-01 : f32
      %115 = vector.broadcast %cst_55 : f32 to vector<8x128xf32>
      %116 = arith.mulf %115, %111 : vector<8x128xf32>
      %117 = arith.mulf %116, %111 : vector<8x128xf32>
      %cst_56 = arith.constant 5.000000e-01 : f32
      %118 = vector.broadcast %cst_56 : f32 to vector<8x128xf32>
      %119 = arith.subf %112, %118 : vector<8x128xf32>
      %120 = arith.select %114, %117, %119 : vector<8x128xi1>, vector<8x128xf32>
      %cst_57 = arith.constant 9.99999997E-7 : f32
      %121 = vector.broadcast %cst_57 : f32 to vector<8x128xf32>
      %122 = arith.addf %77, %121 : vector<8x128xf32>
      %123 = math.log %122 : vector<8x128xf32>
      %cst_58 = arith.constant 0.000000e+00 : f32
      %124 = vector.broadcast %cst_58 : f32 to vector<8x128xf32>
      %125 = arith.subf %124, %123 : vector<8x128xf32>
      %cst_59 = arith.constant 1.000000e+00 : f32
      %126 = vector.broadcast %cst_59 : f32 to vector<8x128xf32>
      %127 = arith.subf %126, %77 : vector<8x128xf32>
      %cst_60 = arith.constant 9.99999997E-7 : f32
      %128 = vector.broadcast %cst_60 : f32 to vector<8x128xf32>
      %129 = arith.addf %127, %128 : vector<8x128xf32>
      %130 = math.log %129 : vector<8x128xf32>
      %cst_61 = arith.constant 0.000000e+00 : f32
      %131 = vector.broadcast %cst_61 : f32 to vector<8x128xf32>
      %132 = arith.subf %131, %130 : vector<8x128xf32>
      %cst_62 = arith.constant 5.000000e-01 : f32
      %133 = vector.broadcast %cst_62 : f32 to vector<8x128xf32>
      %134 = arith.cmpf ogt, %77, %133 : vector<8x128xf32>
      %135 = arith.mulf %103, %110 : vector<8x128xf32>
      %136 = arith.mulf %103, %120 : vector<8x128xf32>
      %137 = arith.mulf %105, %125 : vector<8x128xf32>
      %138 = arith.mulf %103, %132 : vector<8x128xf32>
      %cst_63 = arith.constant 3.000000e+00 : f32
      %139 = vector.broadcast %cst_63 : f32 to vector<8x128xf32>
      %140 = arith.cmpf ogt, %112, %139 : vector<8x128xf32>
      %141 = arith.extui %140 : vector<8x128xi1> to vector<8x128xi32>
      %142 = arith.sitofp %141 : vector<8x128xi32> to vector<8x128xf32>
      %143 = arith.mulf %101, %142 : vector<8x128xf32>
      %144 = arith.mulf %101, %112 : vector<8x128xf32>
      %145 = arith.andi %134, %93 : vector<8x128xi1>
      %146 = arith.extui %145 : vector<8x128xi1> to vector<8x128xi32>
      %147 = arith.sitofp %146 : vector<8x128xi32> to vector<8x128xf32>
      %148 = arith.andi %134, %99 : vector<8x128xi1>
      %149 = arith.ori %148, %93 : vector<8x128xi1>
      %150 = arith.extui %149 : vector<8x128xi1> to vector<8x128xi32>
      %151 = arith.sitofp %150 : vector<8x128xi32> to vector<8x128xf32>
      %cst_64 = arith.constant dense<true> : vector<8x128xi1>
      %152 = arith.xori %134, %cst_64 : vector<8x128xi1>
      %153 = arith.andi %152, %99 : vector<8x128xi1>
      %154 = arith.extui %153 : vector<8x128xi1> to vector<8x128xi32>
      %155 = arith.sitofp %154 : vector<8x128xi32> to vector<8x128xf32>
      %cst_65 = arith.constant dense<true> : vector<8x128xi1>
      %156 = arith.xori %134, %cst_65 : vector<8x128xi1>
      %157 = arith.andi %156, %93 : vector<8x128xi1>
      %158 = arith.ori %157, %99 : vector<8x128xi1>
      %159 = arith.extui %158 : vector<8x128xi1> to vector<8x128xi32>
      %160 = arith.sitofp %159 : vector<8x128xi32> to vector<8x128xf32>
      %161 = arith.extui %99 : vector<8x128xi1> to vector<8x128xi32>
      %162 = arith.sitofp %161 : vector<8x128xi32> to vector<8x128xf32>
      %163 = arith.extui %95 : vector<8x128xi1> to vector<8x128xi32>
      %164 = arith.sitofp %163 : vector<8x128xi32> to vector<8x128xf32>
      %cst_66 = arith.constant 9.99999997E-7 : f32
      %165 = vector.broadcast %cst_66 : f32 to vector<8x128xf32>
      %166 = arith.addf %83, %165 : vector<8x128xf32>
      %167 = math.log %166 : vector<8x128xf32>
      %cst_67 = arith.constant 0.000000e+00 : f32
      %168 = vector.broadcast %cst_67 : f32 to vector<8x128xf32>
      %169 = arith.subf %168, %167 : vector<8x128xf32>
      %170 = arith.subf %85, %79 : vector<8x128xf32>
      %171 = math.absf %170 : vector<8x128xf32>
      %cst_68 = arith.constant 1.000000e+00 : f32
      %172 = vector.broadcast %cst_68 : f32 to vector<8x128xf32>
      %173 = arith.cmpf olt, %171, %172 : vector<8x128xf32>
      %cst_69 = arith.constant 5.000000e-01 : f32
      %174 = vector.broadcast %cst_69 : f32 to vector<8x128xf32>
      %175 = arith.mulf %174, %170 : vector<8x128xf32>
      %176 = arith.mulf %175, %170 : vector<8x128xf32>
      %cst_70 = arith.constant 5.000000e-01 : f32
      %177 = vector.broadcast %cst_70 : f32 to vector<8x128xf32>
      %178 = arith.subf %171, %177 : vector<8x128xf32>
      %179 = arith.select %173, %176, %178 : vector<8x128xi1>, vector<8x128xf32>
      %cst_71 = arith.constant 9.99999997E-7 : f32
      %180 = vector.broadcast %cst_71 : f32 to vector<8x128xf32>
      %181 = arith.addf %87, %180 : vector<8x128xf32>
      %182 = math.log %181 : vector<8x128xf32>
      %cst_72 = arith.constant 0.000000e+00 : f32
      %183 = vector.broadcast %cst_72 : f32 to vector<8x128xf32>
      %184 = arith.subf %183, %182 : vector<8x128xf32>
      %cst_73 = arith.constant 1.000000e+00 : f32
      %185 = vector.broadcast %cst_73 : f32 to vector<8x128xf32>
      %186 = arith.subf %185, %87 : vector<8x128xf32>
      %cst_74 = arith.constant 9.99999997E-7 : f32
      %187 = vector.broadcast %cst_74 : f32 to vector<8x128xf32>
      %188 = arith.addf %186, %187 : vector<8x128xf32>
      %189 = math.log %188 : vector<8x128xf32>
      %cst_75 = arith.constant 0.000000e+00 : f32
      %190 = vector.broadcast %cst_75 : f32 to vector<8x128xf32>
      %191 = arith.subf %190, %189 : vector<8x128xf32>
      %cst_76 = arith.constant 5.000000e-01 : f32
      %192 = vector.broadcast %cst_76 : f32 to vector<8x128xf32>
      %193 = arith.cmpf ogt, %87, %192 : vector<8x128xf32>
      %194 = arith.mulf %162, %169 : vector<8x128xf32>
      %195 = arith.mulf %162, %179 : vector<8x128xf32>
      %196 = arith.mulf %164, %184 : vector<8x128xf32>
      %197 = arith.mulf %162, %191 : vector<8x128xf32>
      %cst_77 = arith.constant 3.000000e+00 : f32
      %198 = vector.broadcast %cst_77 : f32 to vector<8x128xf32>
      %199 = arith.cmpf ogt, %171, %198 : vector<8x128xf32>
      %200 = arith.extui %199 : vector<8x128xi1> to vector<8x128xi32>
      %201 = arith.sitofp %200 : vector<8x128xi32> to vector<8x128xf32>
      %202 = arith.mulf %101, %201 : vector<8x128xf32>
      %203 = arith.mulf %101, %171 : vector<8x128xf32>
      %204 = arith.andi %193, %95 : vector<8x128xi1>
      %205 = arith.extui %204 : vector<8x128xi1> to vector<8x128xi32>
      %206 = arith.sitofp %205 : vector<8x128xi32> to vector<8x128xf32>
      %207 = arith.andi %193, %99 : vector<8x128xi1>
      %208 = arith.ori %207, %95 : vector<8x128xi1>
      %209 = arith.extui %208 : vector<8x128xi1> to vector<8x128xi32>
      %210 = arith.sitofp %209 : vector<8x128xi32> to vector<8x128xf32>
      %cst_78 = arith.constant dense<true> : vector<8x128xi1>
      %211 = arith.xori %193, %cst_78 : vector<8x128xi1>
      %212 = arith.andi %211, %99 : vector<8x128xi1>
      %213 = arith.extui %212 : vector<8x128xi1> to vector<8x128xi32>
      %214 = arith.sitofp %213 : vector<8x128xi32> to vector<8x128xf32>
      %cst_79 = arith.constant dense<true> : vector<8x128xi1>
      %215 = arith.xori %193, %cst_79 : vector<8x128xi1>
      %216 = arith.andi %215, %95 : vector<8x128xi1>
      %217 = arith.ori %216, %99 : vector<8x128xi1>
      %218 = arith.extui %217 : vector<8x128xi1> to vector<8x128xi32>
      %219 = arith.sitofp %218 : vector<8x128xi32> to vector<8x128xf32>
      %220 = arith.subf %89, %91 : vector<8x128xf32>
      %221 = math.absf %220 : vector<8x128xf32>
      %cst_80 = arith.constant 3.000000e+00 : f32
      %222 = vector.broadcast %cst_80 : f32 to vector<8x128xf32>
      %223 = arith.cmpf ogt, %221, %222 : vector<8x128xf32>
      %224 = arith.extui %223 : vector<8x128xi1> to vector<8x128xi32>
      %225 = arith.sitofp %224 : vector<8x128xi32> to vector<8x128xf32>
      %226 = arith.mulf %101, %225 : vector<8x128xf32>
      %cst_81 = arith.constant 1.000000e+00 : f32
      %227 = vector.broadcast %cst_81 : f32 to vector<8x128xf32>
      %228 = arith.cmpf olt, %221, %227 : vector<8x128xf32>
      %cst_82 = arith.constant 5.000000e-01 : f32
      %229 = vector.broadcast %cst_82 : f32 to vector<8x128xf32>
      %230 = arith.mulf %229, %220 : vector<8x128xf32>
      %231 = arith.mulf %230, %220 : vector<8x128xf32>
      %cst_83 = arith.constant 5.000000e-01 : f32
      %232 = vector.broadcast %cst_83 : f32 to vector<8x128xf32>
      %233 = arith.subf %221, %232 : vector<8x128xf32>
      %234 = arith.select %228, %231, %233 : vector<8x128xi1>, vector<8x128xf32>
      %235 = arith.addf %arg16, %135 : vector<8x128xf32>
      %236 = arith.addf %arg17, %103 : vector<8x128xf32>
      %237 = arith.addf %arg18, %136 : vector<8x128xf32>
      %238 = arith.addf %arg19, %137 : vector<8x128xf32>
      %239 = arith.addf %arg20, %105 : vector<8x128xf32>
      %240 = arith.addf %arg21, %138 : vector<8x128xf32>
      %241 = arith.addf %arg22, %143 : vector<8x128xf32>
      %242 = arith.addf %arg23, %144 : vector<8x128xf32>
      %243 = arith.addf %arg24, %147 : vector<8x128xf32>
      %244 = arith.addf %arg25, %151 : vector<8x128xf32>
      %245 = arith.addf %arg26, %155 : vector<8x128xf32>
      %246 = arith.addf %arg27, %160 : vector<8x128xf32>
      %247 = arith.addf %arg28, %194 : vector<8x128xf32>
      %248 = arith.addf %arg29, %162 : vector<8x128xf32>
      %249 = arith.addf %arg30, %195 : vector<8x128xf32>
      %250 = arith.addf %arg31, %196 : vector<8x128xf32>
      %251 = arith.addf %arg32, %164 : vector<8x128xf32>
      %252 = arith.addf %arg33, %197 : vector<8x128xf32>
      %253 = arith.addf %arg34, %202 : vector<8x128xf32>
      %254 = arith.addf %arg35, %203 : vector<8x128xf32>
      %255 = arith.addf %arg36, %206 : vector<8x128xf32>
      %256 = arith.addf %arg37, %210 : vector<8x128xf32>
      %257 = arith.addf %arg38, %214 : vector<8x128xf32>
      %258 = arith.addf %arg39, %219 : vector<8x128xf32>
      %259 = arith.addf %arg40, %226 : vector<8x128xf32>
      %260 = arith.addf %arg41, %221 : vector<8x128xf32>
      %261 = arith.addf %arg42, %234 : vector<8x128xf32>
      scf.yield %235, %236, %237, %238, %239, %240, %241, %242, %243, %244, %245, %246, %247, %248, %249, %250, %251, %252, %253, %254, %255, %256, %257, %258, %259, %260, %261 : vector<8x128xf32>, vector<8x128xf32>, vector<8x128xf32>, vector<8x128xf32>, vector<8x128xf32>, vector<8x128xf32>, vector<8x128xf32>, vector<8x128xf32>, vector<8x128xf32>, vector<8x128xf32>, vector<8x128xf32>, vector<8x128xf32>, vector<8x128xf32>, vector<8x128xf32>, vector<8x128xf32>, vector<8x128xf32>, vector<8x128xf32>, vector<8x128xf32>, vector<8x128xf32>, vector<8x128xf32>, vector<8x128xf32>, vector<8x128xf32>, vector<8x128xf32>, vector<8x128xf32>, vector<8x128xf32>, vector<8x128xf32>, vector<8x128xf32>
    }
    %c2_i32_28 = arith.constant 2 : i32
    %c0 = arith.constant 0 : index
    %c0_29 = arith.constant 0 : index
    %c0_30 = arith.constant 0 : index
    %c0_31 = arith.constant 0 : index
    %32 = vector.load %arg14[%c0, %c0_29, %c0_30, %c0_31] : memref<1x27x8x128xf32, #tpu.memory_space<vmem>>, vector<1x27x8x128xf32>
    %33 = vector.shape_cast %31#0 : vector<8x128xf32> to vector<1x8x128xf32>
    %34 = vector.shape_cast %31#1 : vector<8x128xf32> to vector<1x8x128xf32>
    %35 = vector.shape_cast %31#2 : vector<8x128xf32> to vector<1x8x128xf32>
    %36 = vector.shape_cast %31#3 : vector<8x128xf32> to vector<1x8x128xf32>
    %37 = vector.shape_cast %31#4 : vector<8x128xf32> to vector<1x8x128xf32>
    %38 = vector.shape_cast %31#5 : vector<8x128xf32> to vector<1x8x128xf32>
    %39 = vector.shape_cast %31#6 : vector<8x128xf32> to vector<1x8x128xf32>
    %40 = vector.shape_cast %31#7 : vector<8x128xf32> to vector<1x8x128xf32>
    %41 = vector.shape_cast %31#8 : vector<8x128xf32> to vector<1x8x128xf32>
    %42 = vector.shape_cast %31#9 : vector<8x128xf32> to vector<1x8x128xf32>
    %43 = vector.shape_cast %31#10 : vector<8x128xf32> to vector<1x8x128xf32>
    %44 = vector.shape_cast %31#11 : vector<8x128xf32> to vector<1x8x128xf32>
    %45 = vector.shape_cast %31#12 : vector<8x128xf32> to vector<1x8x128xf32>
    %46 = vector.shape_cast %31#13 : vector<8x128xf32> to vector<1x8x128xf32>
    %47 = vector.shape_cast %31#14 : vector<8x128xf32> to vector<1x8x128xf32>
    %48 = vector.shape_cast %31#15 : vector<8x128xf32> to vector<1x8x128xf32>
    %49 = vector.shape_cast %31#16 : vector<8x128xf32> to vector<1x8x128xf32>
    %50 = vector.shape_cast %31#17 : vector<8x128xf32> to vector<1x8x128xf32>
    %51 = vector.shape_cast %31#18 : vector<8x128xf32> to vector<1x8x128xf32>
    %52 = vector.shape_cast %31#19 : vector<8x128xf32> to vector<1x8x128xf32>
    %53 = vector.shape_cast %31#20 : vector<8x128xf32> to vector<1x8x128xf32>
    %54 = vector.shape_cast %31#21 : vector<8x128xf32> to vector<1x8x128xf32>
    %55 = vector.shape_cast %31#22 : vector<8x128xf32> to vector<1x8x128xf32>
    %56 = vector.shape_cast %31#23 : vector<8x128xf32> to vector<1x8x128xf32>
    %57 = vector.shape_cast %31#24 : vector<8x128xf32> to vector<1x8x128xf32>
    %58 = vector.shape_cast %31#25 : vector<8x128xf32> to vector<1x8x128xf32>
    %59 = vector.shape_cast %31#26 : vector<8x128xf32> to vector<1x8x128xf32>
    %60 = tpu.concatenate %33, %34, %35, %36, %37, %38, %39, %40, %41, %42, %43, %44, %45, %46, %47, %48 in 0 : vector<1x8x128xf32>, vector<1x8x128xf32>, vector<1x8x128xf32>, vector<1x8x128xf32>, vector<1x8x128xf32>, vector<1x8x128xf32>, vector<1x8x128xf32>, vector<1x8x128xf32>, vector<1x8x128xf32>, vector<1x8x128xf32>, vector<1x8x128xf32>, vector<1x8x128xf32>, vector<1x8x128xf32>, vector<1x8x128xf32>, vector<1x8x128xf32>, vector<1x8x128xf32> -> vector<16x8x128xf32>
    %61 = tpu.concatenate %49, %50, %51, %52, %53, %54, %55, %56, %57, %58, %59 in 0 : vector<1x8x128xf32>, vector<1x8x128xf32>, vector<1x8x128xf32>, vector<1x8x128xf32>, vector<1x8x128xf32>, vector<1x8x128xf32>, vector<1x8x128xf32>, vector<1x8x128xf32>, vector<1x8x128xf32>, vector<1x8x128xf32>, vector<1x8x128xf32> -> vector<11x8x128xf32>
    %62 = tpu.concatenate %60, %61 in 0 : vector<16x8x128xf32>, vector<11x8x128xf32> -> vector<27x8x128xf32>
    %63 = vector.shape_cast %62 : vector<27x8x128xf32> to vector<1x27x8x128xf32>
    %64 = arith.addf %32, %63 : vector<1x27x8x128xf32>
    %c0_32 = arith.constant 0 : index
    %c0_33 = arith.constant 0 : index
    %c0_34 = arith.constant 0 : index
    %c0_35 = arith.constant 0 : index
    %65 = vector.load %arg14[%c0_32, %c0_33, %c0_34, %c0_35] : memref<1x27x8x128xf32, #tpu.memory_space<vmem>>, vector<1x27x8x128xf32>
    tpu.vector_store %arg14[%c0_32, %c0_33, %c0_34, %c0_35], %64 {strides = array<i32>} : memref<1x27x8x128xf32, #tpu.memory_space<vmem>>, vector<1x27x8x128xf32>,
    return
  }
  func.func @transform_0(%arg0: i32, %arg1: i32) -> (i32, i32) {
    %c1_i32 = arith.constant 1 : i32
    %0 = arith.muli %arg0, %c1_i32 : i32
    %1 = arith.addi %0, %arg1 : i32
    %c0_i32 = arith.constant 0 : i32
    %c0_i32_0 = arith.constant 0 : i32
    return %1, %c0_i32 : i32, i32
  }
  func.func @transform_1(%arg0: i32, %arg1: i32) -> (i32, i32) {
    %c1_i32 = arith.constant 1 : i32
    %0 = arith.muli %arg0, %c1_i32 : i32
    %1 = arith.addi %0, %arg1 : i32
    %c0_i32 = arith.constant 0 : i32
    %c0_i32_0 = arith.constant 0 : i32
    return %1, %c0_i32 : i32, i32
  }
  func.func @transform_2(%arg0: i32, %arg1: i32) -> (i32, i32) {
    %c1_i32 = arith.constant 1 : i32
    %0 = arith.muli %arg0, %c1_i32 : i32
    %1 = arith.addi %0, %arg1 : i32
    %c0_i32 = arith.constant 0 : i32
    %c0_i32_0 = arith.constant 0 : i32
    return %1, %c0_i32 : i32, i32
  }
  func.func @transform_3(%arg0: i32, %arg1: i32) -> (i32, i32) {
    %c1_i32 = arith.constant 1 : i32
    %0 = arith.muli %arg0, %c1_i32 : i32
    %1 = arith.addi %0, %arg1 : i32
    %c0_i32 = arith.constant 0 : i32
    %c0_i32_0 = arith.constant 0 : i32
    return %1, %c0_i32 : i32, i32
  }
  func.func @transform_4(%arg0: i32, %arg1: i32) -> (i32, i32) {
    %c1_i32 = arith.constant 1 : i32
    %0 = arith.muli %arg0, %c1_i32 : i32
    %1 = arith.addi %0, %arg1 : i32
    %c0_i32 = arith.constant 0 : i32
    %c0_i32_0 = arith.constant 0 : i32
    return %1, %c0_i32 : i32, i32
  }
  func.func @transform_5(%arg0: i32, %arg1: i32) -> (i32, i32) {
    %c1_i32 = arith.constant 1 : i32
    %0 = arith.muli %arg0, %c1_i32 : i32
    %1 = arith.addi %0, %arg1 : i32
    %c0_i32 = arith.constant 0 : i32
    %c0_i32_0 = arith.constant 0 : i32
    return %1, %c0_i32 : i32, i32
  }
  func.func @transform_6(%arg0: i32, %arg1: i32) -> (i32, i32) {
    %c1_i32 = arith.constant 1 : i32
    %0 = arith.muli %arg0, %c1_i32 : i32
    %1 = arith.addi %0, %arg1 : i32
    %c0_i32 = arith.constant 0 : i32
    %c0_i32_0 = arith.constant 0 : i32
    return %1, %c0_i32 : i32, i32
  }
  func.func @transform_7(%arg0: i32, %arg1: i32) -> (i32, i32) {
    %c1_i32 = arith.constant 1 : i32
    %0 = arith.muli %arg0, %c1_i32 : i32
    %1 = arith.addi %0, %arg1 : i32
    %c0_i32 = arith.constant 0 : i32
    %c0_i32_0 = arith.constant 0 : i32
    return %1, %c0_i32 : i32, i32
  }
  func.func @transform_8(%arg0: i32, %arg1: i32) -> (i32, i32) {
    %c1_i32 = arith.constant 1 : i32
    %0 = arith.muli %arg0, %c1_i32 : i32
    %1 = arith.addi %0, %arg1 : i32
    %c0_i32 = arith.constant 0 : i32
    %c0_i32_0 = arith.constant 0 : i32
    return %1, %c0_i32 : i32, i32
  }
  func.func @transform_9(%arg0: i32, %arg1: i32) -> (i32, i32) {
    %c1_i32 = arith.constant 1 : i32
    %0 = arith.muli %arg0, %c1_i32 : i32
    %1 = arith.addi %0, %arg1 : i32
    %c0_i32 = arith.constant 0 : i32
    %c0_i32_0 = arith.constant 0 : i32
    return %1, %c0_i32 : i32, i32
  }
  func.func @transform_10(%arg0: i32, %arg1: i32) -> (i32, i32) {
    %c1_i32 = arith.constant 1 : i32
    %0 = arith.muli %arg0, %c1_i32 : i32
    %1 = arith.addi %0, %arg1 : i32
    %c0_i32 = arith.constant 0 : i32
    %c0_i32_0 = arith.constant 0 : i32
    return %1, %c0_i32 : i32, i32
  }
  func.func @transform_11(%arg0: i32, %arg1: i32) -> (i32, i32) {
    %c1_i32 = arith.constant 1 : i32
    %0 = arith.muli %arg0, %c1_i32 : i32
    %1 = arith.addi %0, %arg1 : i32
    %c0_i32 = arith.constant 0 : i32
    %c0_i32_0 = arith.constant 0 : i32
    return %1, %c0_i32 : i32, i32
  }
  func.func @transform_12(%arg0: i32, %arg1: i32) -> (i32, i32, i32, i32) {
    %c0_i32 = arith.constant 0 : i32
    %c0_i32_0 = arith.constant 0 : i32
    %c0_i32_1 = arith.constant 0 : i32
    %c0_i32_2 = arith.constant 0 : i32
    return %arg0, %c0_i32, %c0_i32_0, %c0_i32_1 : i32, i32, i32, i32
  }
}

</mosaic_0001>

<llo_original>
// kernel: _compute_stats.1
$region0: #{_compute_stats.1}
  #allocation0 [shape = 'u32[]', space=smem, size = 0x4, offset = 0x4, fixed_abs, tag = 'smem constant byte address 0x4 - core index']
  #allocation1 [shape = 'u32[144,128]{1,0:T(1,128)}', space=vmem, size = 0x12000, scoped, tag = 'internal scratch']
  %s0 = inlined_call_operand.vmem [shape: f32[32,128], index: 0, kind: input, shape index: {}]
  %s1 = inlined_call_operand.vmem [shape: f32[32,128], index: 1, kind: input, shape index: {}]
  %s2 = inlined_call_operand.vmem [shape: f32[32,128], index: 2, kind: input, shape index: {}]
  %s3 = inlined_call_operand.vmem [shape: f32[32,128], index: 3, kind: input, shape index: {}]
  %s4 = inlined_call_operand.vmem [shape: f32[32,128], index: 4, kind: input, shape index: {}]
  %s5 = inlined_call_operand.vmem [shape: f32[32,128], index: 5, kind: input, shape index: {}]
  %s6 = inlined_call_operand.vmem [shape: f32[32,128], index: 6, kind: input, shape index: {}]
  %s7 = inlined_call_operand.vmem [shape: f32[32,128], index: 7, kind: input, shape index: {}]
  %s8 = inlined_call_operand.vmem [shape: f32[32,128], index: 8, kind: input, shape index: {}]
  %s9 = inlined_call_operand.vmem [shape: f32[32,128], index: 9, kind: input, shape index: {}]
  %s10 = inlined_call_operand.vmem [shape: f32[32,128], index: 10, kind: input, shape index: {}]
  %s11 = inlined_call_operand.vmem [shape: f32[32,128], index: 11, kind: input, shape index: {}]
  %s12 = inlined_call_operand.hbm [shape: f32[2,27,8,128], index: 12, kind: output, shape index: {}]
  %s13 = sld [smem:[#allocation0]]
  $region92: #{_compute_stats.1} parent=0
    _
  %s15 = ssub.s32 1, %s13
  %s16 = scalar_select 0, %s15, %s13
  $region1: #{_compute_stats.1} parent=0
    #allocation2 [shape = 'u8[221184]{0}', space=vmem, size = 0x36000, scoped, tag = 'output window, operand 0']
    #allocation3 [shape = 's32[2]{0}', space=sflag, size = 0x8, scoped, tag = 'scoped memory for _compute_stats.1']
    %17 = vsyncpa [#allocation3], 0
    %s18 = scalar_lea.sflag [#allocation3], 1
    %19 = vsyncpa %s18, 0
    loop: start=0, step=1, limit=4
    $region2: #{_compute_stats.1} parent=1 // loop_pre_header
      _
    $region3: #{_compute_stats.1} parent=1 // loop_header
      %s21 = sphi 0, %s25
      %p22 = scmp.ge.s32.totalorder %s21, 4
      %s28 = sphi 0, %s40
      %s29 = sphi 0, %s36
      %s30 = sphi 0, %s28
      %s31 = sphi 0, %s29
      %s32 = sphi 0, %s30
      %s33 = sphi 0, %s31
      %s45 = sphi 0, %s47
      %s48 = sphi 0, %s45
      %s49 = sphi 0, %s48
      %s65 = sphi 0, %s49
      %s73 = sphi 0, %s75
      %s76 = sphi 0, %s73
      %s77 = sphi 0, %s76
      %s93 = sphi 0, %s77
      %s101 = sphi 0, %s103
      %s104 = sphi 0, %s101
      %s105 = sphi 0, %s104
      %s121 = sphi 0, %s105
      %s129 = sphi 0, %s131
      %s132 = sphi 0, %s129
      %s133 = sphi 0, %s132
      %s149 = sphi 0, %s133
      %s157 = sphi 0, %s159
      %s160 = sphi 0, %s157
      %s161 = sphi 0, %s160
      %s177 = sphi 0, %s161
      %s185 = sphi 0, %s187
      %s188 = sphi 0, %s185
      %s189 = sphi 0, %s188
      %s205 = sphi 0, %s189
      %s213 = sphi 0, %s215
      %s216 = sphi 0, %s213
      %s217 = sphi 0, %s216
      %s233 = sphi 0, %s217
      %s241 = sphi 0, %s243
      %s244 = sphi 0, %s241
      %s245 = sphi 0, %s244
      %s261 = sphi 0, %s245
      %s269 = sphi 0, %s271
      %s272 = sphi 0, %s269
      %s273 = sphi 0, %s272
      %s289 = sphi 0, %s273
      %s297 = sphi 0, %s299
      %s300 = sphi 0, %s297
      %s301 = sphi 0, %s300
      %s317 = sphi 0, %s301
      %s325 = sphi 0, %s327
      %s328 = sphi 0, %s325
      %s329 = sphi 0, %s328
      %s345 = sphi 0, %s329
      %s353 = sphi 0, %s355
      %s356 = sphi 0, %s353
      %s357 = sphi 0, %s356
      %s373 = sphi 0, %s357
      %s379 = sphi 0, %s381
      %s382 = sphi 0, %s379
      %s383 = sphi 0, %s382
      %s399 = sphi 0, %s383
    $region4: #{_compute_stats.1} parent=1 // loop_header_branch
      %24 = sbr.rel (%p22) target = $region8
    $region5: #{_compute_stats.1} parent=1 // loop_body
      %s26 = ssub.s32 %s21, 1
      %s27 = ssub.s32 %s21, 2
      %s34 = sadd.s32 1, %s29
      %p35 = scmp.ge.s32.totalorder %s34, 1
      %s36 = scalar_select %p35, 0, %s34
      %s37 = sadd.s32 1, %s28
      %s38 = scalar_select %p35, %s37, %s28
      %p39 = scmp.ge.s32.totalorder %s38, 2
      %s40 = scalar_select %p39, 0, %s38
      %s41 = sadd.s32 %s28, %s29
      %s42 = sadd.s32 %s40, %s36
      %s43 = ssub.s32 %s41, %s42
      %p44 = scmp.eq.s32.totalorder %s43, 0
      %s46 = sadd.s32 %s45, 1
      %s47 = scalar_select %p44, %s45, %s46
      %p50 = pneg %p44
      %p51 = scmp.eq.s32.totalorder %s21, 1
      %p52 = por %p50, %p51
      %p53 = scmp.ne.s32.totalorder %s45, %s48
      %p54 = scmp.eq.s32.totalorder %s21, 0
      %p55 = por %p53, %p54
      %p56 = scmp.ne.s32.totalorder %s45, %s48
      %p57 = scmp.eq.s32.totalorder %s26, 1
      %p58 = por %p56, %p57
      %p59 = scmp.ne.s32.totalorder %s48, %s49
      %p60 = scmp.eq.s32.totalorder %s26, 0
      %p61 = por %p59, %p60
      %p62 = scmp.ne.s32.totalorder %s48, %s49
      %p63 = scmp.eq.s32.totalorder %s27, 1
      %p64 = por %p62, %p63
      %p66 = scmp.ne.s32.totalorder %s49, %s65
      %p67 = scmp.eq.s32.totalorder %s27, 0
      %p68 = por %p66, %p67
      %s69 = sadd.s32 %s28, %s29
      %s70 = sadd.s32 %s40, %s36
      %s71 = ssub.s32 %s69, %s70
      %p72 = scmp.eq.s32.totalorder %s71, 0
      %s74 = sadd.s32 %s73, 1
      %s75 = scalar_select %p72, %s73, %s74
      %p78 = pneg %p72
      %p79 = scmp.eq.s32.totalorder %s21, 1
      %p80 = por %p78, %p79
      %p81 = scmp.ne.s32.totalorder %s73, %s76
      %p82 = scmp.eq.s32.totalorder %s21, 0
      %p83 = por %p81, %p82
      %p84 = scmp.ne.s32.totalorder %s73, %s76
      %p85 = scmp.eq.s32.totalorder %s26, 1
      %p86 = por %p84, %p85
      %p87 = scmp.ne.s32.totalorder %s76, %s77
      %p88 = scmp.eq.s32.totalorder %s26, 0
      %p89 = por %p87, %p88
      %p90 = scmp.ne.s32.totalorder %s76, %s77
      %p91 = scmp.eq.s32.totalorder %s27, 1
      %p92 = por %p90, %p91
      %p94 = scmp.ne.s32.totalorder %s77, %s93
      %p95 = scmp.eq.s32.totalorder %s27, 0
      %p96 = por %p94, %p95
      %s97 = sadd.s32 %s28, %s29
      %s98 = sadd.s32 %s40, %s36
      %s99 = ssub.s32 %s97, %s98
      %p100 = scmp.eq.s32.totalorder %s99, 0
      %s102 = sadd.s32 %s101, 1
      %s103 = scalar_select %p100, %s101, %s102
      %p106 = pneg %p100
      %p107 = scmp.eq.s32.totalorder %s21, 1
      %p108 = por %p106, %p107
      %p109 = scmp.ne.s32.totalorder %s101, %s104
      %p110 = scmp.eq.s32.totalorder %s21, 0
      %p111 = por %p109, %p110
      %p112 = scmp.ne.s32.totalorder %s101, %s104
      %p113 = scmp.eq.s32.totalorder %s26, 1
      %p114 = por %p112, %p113
      %p115 = scmp.ne.s32.totalorder %s104, %s105
      %p116 = scmp.eq.s32.totalorder %s26, 0
      %p117 = por %p115, %p116
      %p118 = scmp.ne.s32.totalorder %s104, %s105
      %p119 = scmp.eq.s32.totalorder %s27, 1
      %p120 = por %p118, %p119
      %p122 = scmp.ne.s32.totalorder %s105, %s121
      %p123 = scmp.eq.s32.totalorder %s27, 0
      %p124 = por %p122, %p123
      %s125 = sadd.s32 %s28, %s29
      %s126 = sadd.s32 %s40, %s36
      %s127 = ssub.s32 %s125, %s126
      %p128 = scmp.eq.s32.totalorder %s127, 0
      %s130 = sadd.s32 %s129, 1
      %s131 = scalar_select %p128, %s129, %s130
      %p134 = pneg %p128
      %p135 = scmp.eq.s32.totalorder %s21, 1
      %p136 = por %p134, %p135
      %p137 = scmp.ne.s32.totalorder %s129, %s132
      %p138 = scmp.eq.s32.totalorder %s21, 0
      %p139 = por %p137, %p138
      %p140 = scmp.ne.s32.totalorder %s129, %s132
      %p141 = scmp.eq.s32.totalorder %s26, 1
      %p142 = por %p140, %p141
      %p143 = scmp.ne.s32.totalorder %s132, %s133
      %p144 = scmp.eq.s32.totalorder %s26, 0
      %p145 = por %p143, %p144
      %p146 = scmp.ne.s32.totalorder %s132, %s133
      %p147 = scmp.eq.s32.totalorder %s27, 1
      %p148 = por %p146, %p147
      %p150 = scmp.ne.s32.totalorder %s133, %s149
      %p151 = scmp.eq.s32.totalorder %s27, 0
      %p152 = por %p150, %p151
      %s153 = sadd.s32 %s28, %s29
      %s154 = sadd.s32 %s40, %s36
      %s155 = ssub.s32 %s153, %s154
      %p156 = scmp.eq.s32.totalorder %s155, 0
      %s158 = sadd.s32 %s157, 1
      %s159 = scalar_select %p156, %s157, %s158
      %p162 = pneg %p156
      %p163 = scmp.eq.s32.totalorder %s21, 1
      %p164 = por %p162, %p163
      %p165 = scmp.ne.s32.totalorder %s157, %s160
      %p166 = scmp.eq.s32.totalorder %s21, 0
      %p167 = por %p165, %p166
      %p168 = scmp.ne.s32.totalorder %s157, %s160
      %p169 = scmp.eq.s32.totalorder %s26, 1
      %p170 = por %p168, %p169
      %p171 = scmp.ne.s32.totalorder %s160, %s161
      %p172 = scmp.eq.s32.totalorder %s26, 0
      %p173 = por %p171, %p172
      %p174 = scmp.ne.s32.totalorder %s160, %s161
      %p175 = scmp.eq.s32.totalorder %s27, 1
      %p176 = por %p174, %p175
      %p178 = scmp.ne.s32.totalorder %s161, %s177
      %p179 = scmp.eq.s32.totalorder %s27, 0
      %p180 = por %p178, %p179
      %s181 = sadd.s32 %s28, %s29
      %s182 = sadd.s32 %s40, %s36
      %s183 = ssub.s32 %s181, %s182
      %p184 = scmp.eq.s32.totalorder %s183, 0
      %s186 = sadd.s32 %s185, 1
      %s187 = scalar_select %p184, %s185, %s186
      %p190 = pneg %p184
      %p191 = scmp.eq.s32.totalorder %s21, 1
      %p192 = por %p190, %p191
      %p193 = scmp.ne.s32.totalorder %s185, %s188
      %p194 = scmp.eq.s32.totalorder %s21, 0
      %p195 = por %p193, %p194
      %p196 = scmp.ne.s32.totalorder %s185, %s188
      %p197 = scmp.eq.s32.totalorder %s26, 1
      %p198 = por %p196, %p197
      %p199 = scmp.ne.s32.totalorder %s188, %s189
      %p200 = scmp.eq.s32.totalorder %s26, 0
      %p201 = por %p199, %p200
      %p202 = scmp.ne.s32.totalorder %s188, %s189
      %p203 = scmp.eq.s32.totalorder %s27, 1
      %p204 = por %p202, %p203
      %p206 = scmp.ne.s32.totalorder %s189, %s205
      %p207 = scmp.eq.s32.totalorder %s27, 0
      %p208 = por %p206, %p207
      %s209 = sadd.s32 %s28, %s29
      %s210 = sadd.s32 %s40, %s36
      %s211 = ssub.s32 %s209, %s210
      %p212 = scmp.eq.s32.totalorder %s211, 0
      %s214 = sadd.s32 %s213, 1
      %s215 = scalar_select %p212, %s213, %s214
      %p218 = pneg %p212
      %p219 = scmp.eq.s32.totalorder %s21, 1
      %p220 = por %p218, %p219
      %p221 = scmp.ne.s32.totalorder %s213, %s216
      %p222 = scmp.eq.s32.totalorder %s21, 0
      %p223 = por %p221, %p222
      %p224 = scmp.ne.s32.totalorder %s213, %s216
      %p225 = scmp.eq.s32.totalorder %s26, 1
      %p226 = por %p224, %p225
      %p227 = scmp.ne.s32.totalorder %s216, %s217
      %p228 = scmp.eq.s32.totalorder %s26, 0
      %p229 = por %p227, %p228
      %p230 = scmp.ne.s32.totalorder %s216, %s217
      %p231 = scmp.eq.s32.totalorder %s27, 1
      %p232 = por %p230, %p231
      %p234 = scmp.ne.s32.totalorder %s217, %s233
      %p235 = scmp.eq.s32.totalorder %s27, 0
      %p236 = por %p234, %p235
      %s237 = sadd.s32 %s28, %s29
      %s238 = sadd.s32 %s40, %s36
      %s239 = ssub.s32 %s237, %s238
      %p240 = scmp.eq.s32.totalorder %s239, 0
      %s242 = sadd.s32 %s241, 1
      %s243 = scalar_select %p240, %s241, %s242
      %p246 = pneg %p240
      %p247 = scmp.eq.s32.totalorder %s21, 1
      %p248 = por %p246, %p247
      %p249 = scmp.ne.s32.totalorder %s241, %s244
      %p250 = scmp.eq.s32.totalorder %s21, 0
      %p251 = por %p249, %p250
      %p252 = scmp.ne.s32.totalorder %s241, %s244
      %p253 = scmp.eq.s32.totalorder %s26, 1
      %p254 = por %p252, %p253
      %p255 = scmp.ne.s32.totalorder %s244, %s245
      %p256 = scmp.eq.s32.totalorder %s26, 0
      %p257 = por %p255, %p256
      %p258 = scmp.ne.s32.totalorder %s244, %s245
      %p259 = scmp.eq.s32.totalorder %s27, 1
      %p260 = por %p258, %p259
      %p262 = scmp.ne.s32.totalorder %s245, %s261
      %p263 = scmp.eq.s32.totalorder %s27, 0
      %p264 = por %p262, %p263
      %s265 = sadd.s32 %s28, %s29
      %s266 = sadd.s32 %s40, %s36
      %s267 = ssub.s32 %s265, %s266
      %p268 = scmp.eq.s32.totalorder %s267, 0
      %s270 = sadd.s32 %s269, 1
      %s271 = scalar_select %p268, %s269, %s270
      %p274 = pneg %p268
      %p275 = scmp.eq.s32.totalorder %s21, 1
      %p276 = por %p274, %p275
      %p277 = scmp.ne.s32.totalorder %s269, %s272
      %p278 = scmp.eq.s32.totalorder %s21, 0
      %p279 = por %p277, %p278
      %p280 = scmp.ne.s32.totalorder %s269, %s272
      %p281 = scmp.eq.s32.totalorder %s26, 1
      %p282 = por %p280, %p281
      %p283 = scmp.ne.s32.totalorder %s272, %s273
      %p284 = scmp.eq.s32.totalorder %s26, 0
      %p285 = por %p283, %p284
      %p286 = scmp.ne.s32.totalorder %s272, %s273
      %p287 = scmp.eq.s32.totalorder %s27, 1
      %p288 = por %p286, %p287
      %p290 = scmp.ne.s32.totalorder %s273, %s289
      %p291 = scmp.eq.s32.totalorder %s27, 0
      %p292 = por %p290, %p291
      %s293 = sadd.s32 %s28, %s29
      %s294 = sadd.s32 %s40, %s36
      %s295 = ssub.s32 %s293, %s294
      %p296 = scmp.eq.s32.totalorder %s295, 0
      %s298 = sadd.s32 %s297, 1
      %s299 = scalar_select %p296, %s297, %s298
      %p302 = pneg %p296
      %p303 = scmp.eq.s32.totalorder %s21, 1
      %p304 = por %p302, %p303
      %p305 = scmp.ne.s32.totalorder %s297, %s300
      %p306 = scmp.eq.s32.totalorder %s21, 0
      %p307 = por %p305, %p306
      %p308 = scmp.ne.s32.totalorder %s297, %s300
      %p309 = scmp.eq.s32.totalorder %s26, 1
      %p310 = por %p308, %p309
      %p311 = scmp.ne.s32.totalorder %s300, %s301
      %p312 = scmp.eq.s32.totalorder %s26, 0
      %p313 = por %p311, %p312
      %p314 = scmp.ne.s32.totalorder %s300, %s301
      %p315 = scmp.eq.s32.totalorder %s27, 1
      %p316 = por %p314, %p315
      %p318 = scmp.ne.s32.totalorder %s301, %s317
      %p319 = scmp.eq.s32.totalorder %s27, 0
      %p320 = por %p318, %p319
      %s321 = sadd.s32 %s28, %s29
      %s322 = sadd.s32 %s40, %s36
      %s323 = ssub.s32 %s321, %s322
      %p324 = scmp.eq.s32.totalorder %s323, 0
      %s326 = sadd.s32 %s325, 1
      %s327 = scalar_select %p324, %s325, %s326
      %p330 = pneg %p324
      %p331 = scmp.eq.s32.totalorder %s21, 1
      %p332 = por %p330, %p331
      %p333 = scmp.ne.s32.totalorder %s325, %s328
      %p334 = scmp.eq.s32.totalorder %s21, 0
      %p335 = por %p333, %p334
      %p336 = scmp.ne.s32.totalorder %s325, %s328
      %p337 = scmp.eq.s32.totalorder %s26, 1
      %p338 = por %p336, %p337
      %p339 = scmp.ne.s32.totalorder %s328, %s329
      %p340 = scmp.eq.s32.totalorder %s26, 0
      %p341 = por %p339, %p340
      %p342 = scmp.ne.s32.totalorder %s328, %s329
      %p343 = scmp.eq.s32.totalorder %s27, 1
      %p344 = por %p342, %p343
      %p346 = scmp.ne.s32.totalorder %s329, %s345
      %p347 = scmp.eq.s32.totalorder %s27, 0
      %p348 = por %p346, %p347
      %s349 = sadd.s32 %s28, %s29
      %s350 = sadd.s32 %s40, %s36
      %s351 = ssub.s32 %s349, %s350
      %p352 = scmp.eq.s32.totalorder %s351, 0
      %s354 = sadd.s32 %s353, 1
      %s355 = scalar_select %p352, %s353, %s354
      %p358 = pneg %p352
      %p359 = scmp.eq.s32.totalorder %s21, 1
      %p360 = por %p358, %p359
      %p361 = scmp.ne.s32.totalorder %s353, %s356
      %p362 = scmp.eq.s32.totalorder %s21, 0
      %p363 = por %p361, %p362
      %p364 = scmp.ne.s32.totalorder %s353, %s356
      %p365 = scmp.eq.s32.totalorder %s26, 1
      %p366 = por %p364, %p365
      %p367 = scmp.ne.s32.totalorder %s356, %s357
      %p368 = scmp.eq.s32.totalorder %s26, 0
      %p369 = por %p367, %p368
      %p370 = scmp.ne.s32.totalorder %s356, %s357
      %p371 = scmp.eq.s32.totalorder %s27, 1
      %p372 = por %p370, %p371
      %p374 = scmp.ne.s32.totalorder %s357, %s373
      %p375 = scmp.eq.s32.totalorder %s27, 0
      %p376 = por %p374, %p375
      %s377 = ssub.s32 %s28, %s40
      %p378 = scmp.eq.s32.totalorder %s377, 0
      %s380 = sadd.s32 %s379, 1
      %s381 = scalar_select %p378, %s379, %s380
      %p384 = pneg %p378
      %p385 = scmp.eq.s32.totalorder %s21, 1
      %p386 = por %p384, %p385
      %p387 = scmp.ne.s32.totalorder %s379, %s382
      %p388 = scmp.eq.s32.totalorder %s21, 0
      %p389 = por %p387, %p388
      %p390 = scmp.ne.s32.totalorder %s379, %s382
      %p391 = scmp.eq.s32.totalorder %s26, 1
      %p392 = por %p390, %p391
      %p393 = scmp.ne.s32.totalorder %s382, %s383
      %p394 = scmp.eq.s32.totalorder %s26, 0
      %p395 = por %p393, %p394
      %p396 = scmp.ne.s32.totalorder %s382, %s383
      %p397 = scmp.eq.s32.totalorder %s27, 1
      %p398 = por %p396, %p397
      %p400 = scmp.ne.s32.totalorder %s383, %s399
      %p401 = scmp.eq.s32.totalorder %s27, 0
      %p402 = por %p400, %p401
      %p403 = scmp.le.s32.totalorder 1, %s21
      %p404 = scmp.lt.s32.totalorder %s21, 3
      %p405 = pnand %p403, %p404
      %p406 = pneg %p405
      // Predicated region
      $region9: #{_compute_stats.1} parent=5 // pred_check
        _
      $region10: #{_compute_stats.1} parent=5 // pred_check_branch
        %408 = sbr.rel (%p405) target = $region12
      $region11: #{_compute_stats.1} parent=5 // pred_region
        %s409 = ssub.s32 %s21, 1
      $region12: #{_compute_stats.1} parent=5 // pred_fallthru
        _
      %p410 = scmp.lt.s32.totalorder %s21, 2
      // Predicated region
      $region13: #{_compute_stats.1} parent=5 // pred_check
        %p411 = pneg %p410
      $region14: #{_compute_stats.1} parent=5 // pred_check_branch
        %413 = sbr.rel (%p411) target = $region16
      $region15: #{_compute_stats.1} parent=5 // pred_region
        // Predicated region
        $region17: #{_compute_stats.1} parent=15 // pred_check
          %p414 = pneg %p55
        $region18: #{_compute_stats.1} parent=15 // pred_check_branch
          %416 = sbr.rel (%p414) target = $region20
        $region19: #{_compute_stats.1} parent=15 // pred_region
          %s417 = sadd.s32 %s28, %s29
          %s418 = smul.u32 2, %s417
          %p419 = scmp.lt.s32.totalorder %s418, 3
          %s420 = scalar_select %p419, %s418, 3
          %s421 = smul.addr %s420, 8
          %s422 = scalar_lea.vmem %s0, %s421
          %s423 = sadd.s32 %s28, %s29
          %s424 = smul.u32 2, %s423
        $region20: #{_compute_stats.1} parent=15 // pred_fallthru
          _
        // Predicated region
        $region21: #{_compute_stats.1} parent=15 // pred_check
          %p425 = pneg %p83
        $region22: #{_compute_stats.1} parent=15 // pred_check_branch
          %427 = sbr.rel (%p425) target = $region24
        $region23: #{_compute_stats.1} parent=15 // pred_region
          %s428 = sadd.s32 %s28, %s29
          %s429 = smul.u32 2, %s428
          %p430 = scmp.lt.s32.totalorder %s429, 3
          %s431 = scalar_select %p430, %s429, 3
          %s432 = smul.addr %s431, 8
          %s433 = scalar_lea.vmem %s1, %s432
          %s434 = sadd.s32 %s28, %s29
          %s435 = smul.u32 2, %s434
        $region24: #{_compute_stats.1} parent=15 // pred_fallthru
          _
        // Predicated region
        $region25: #{_compute_stats.1} parent=15 // pred_check
          %p436 = pneg %p111
        $region26: #{_compute_stats.1} parent=15 // pred_check_branch
          %438 = sbr.rel (%p436) target = $region28
        $region27: #{_compute_stats.1} parent=15 // pred_region
          %s439 = sadd.s32 %s28, %s29
          %s440 = smul.u32 2, %s439
          %p441 = scmp.lt.s32.totalorder %s440, 3
          %s442 = scalar_select %p441, %s440, 3
          %s443 = smul.addr %s442, 8
          %s444 = scalar_lea.vmem %s2, %s443
          %s445 = sadd.s32 %s28, %s29
          %s446 = smul.u32 2, %s445
        $region28: #{_compute_stats.1} parent=15 // pred_fallthru
          _
        // Predicated region
        $region29: #{_compute_stats.1} parent=15 // pred_check
          %p447 = pneg %p139
        $region30: #{_compute_stats.1} parent=15 // pred_check_branch
          %449 = sbr.rel (%p447) target = $region32
        $region31: #{_compute_stats.1} parent=15 // pred_region
          %s450 = sadd.s32 %s28, %s29
          %s451 = smul.u32 2, %s450
          %p452 = scmp.lt.s32.totalorder %s451, 3
          %s453 = scalar_select %p452, %s451, 3
          %s454 = smul.addr %s453, 8
          %s455 = scalar_lea.vmem %s3, %s454
          %s456 = sadd.s32 %s28, %s29
          %s457 = smul.u32 2, %s456
        $region32: #{_compute_stats.1} parent=15 // pred_fallthru
          _
        // Predicated region
        $region33: #{_compute_stats.1} parent=15 // pred_check
          %p458 = pneg %p167
        $region34: #{_compute_stats.1} parent=15 // pred_check_branch
          %460 = sbr.rel (%p458) target = $region36
        $region35: #{_compute_stats.1} parent=15 // pred_region
          %s461 = sadd.s32 %s28, %s29
          %s462 = smul.u32 2, %s461
          %p463 = scmp.lt.s32.totalorder %s462, 3
          %s464 = scalar_select %p463, %s462, 3
          %s465 = smul.addr %s464, 8
          %s466 = scalar_lea.vmem %s4, %s465
          %s467 = sadd.s32 %s28, %s29
          %s468 = smul.u32 2, %s467
        $region36: #{_compute_stats.1} parent=15 // pred_fallthru
          _
        // Predicated region
        $region37: #{_compute_stats.1} parent=15 // pred_check
          %p469 = pneg %p195
        $region38: #{_compute_stats.1} parent=15 // pred_check_branch
          %471 = sbr.rel (%p469) target = $region40
        $region39: #{_compute_stats.1} parent=15 // pred_region
          %s472 = sadd.s32 %s28, %s29
          %s473 = smul.u32 2, %s472
          %p474 = scmp.lt.s32.totalorder %s473, 3
          %s475 = scalar_select %p474, %s473, 3
          %s476 = smul.addr %s475, 8
          %s477 = scalar_lea.vmem %s5, %s476
          %s478 = sadd.s32 %s28, %s29
          %s479 = smul.u32 2, %s478
        $region40: #{_compute_stats.1} parent=15 // pred_fallthru
          _
        // Predicated region
        $region41: #{_compute_stats.1} parent=15 // pred_check
          %p480 = pneg %p223
        $region42: #{_compute_stats.1} parent=15 // pred_check_branch
          %482 = sbr.rel (%p480) target = $region44
        $region43: #{_compute_stats.1} parent=15 // pred_region
          %s483 = sadd.s32 %s28, %s29
          %s484 = smul.u32 2, %s483
          %p485 = scmp.lt.s32.totalorder %s484, 3
          %s486 = scalar_select %p485, %s484, 3
          %s487 = smul.addr %s486, 8
          %s488 = scalar_lea.vmem %s6, %s487
          %s489 = sadd.s32 %s28, %s29
          %s490 = smul.u32 2, %s489
        $region44: #{_compute_stats.1} parent=15 // pred_fallthru
          _
        // Predicated region
        $region45: #{_compute_stats.1} parent=15 // pred_check
          %p491 = pneg %p251
        $region46: #{_compute_stats.1} parent=15 // pred_check_branch
          %493 = sbr.rel (%p491) target = $region48
        $region47: #{_compute_stats.1} parent=15 // pred_region
          %s494 = sadd.s32 %s28, %s29
          %s495 = smul.u32 2, %s494
          %p496 = scmp.lt.s32.totalorder %s495, 3
          %s497 = scalar_select %p496, %s495, 3
          %s498 = smul.addr %s497, 8
          %s499 = scalar_lea.vmem %s7, %s498
          %s500 = sadd.s32 %s28, %s29
          %s501 = smul.u32 2, %s500
        $region48: #{_compute_stats.1} parent=15 // pred_fallthru
          _
        // Predicated region
        $region49: #{_compute_stats.1} parent=15 // pred_check
          %p502 = pneg %p279
        $region50: #{_compute_stats.1} parent=15 // pred_check_branch
          %504 = sbr.rel (%p502) target = $region52
        $region51: #{_compute_stats.1} parent=15 // pred_region
          %s505 = sadd.s32 %s28, %s29
          %s506 = smul.u32 2, %s505
          %p507 = scmp.lt.s32.totalorder %s506, 3
          %s508 = scalar_select %p507, %s506, 3
          %s509 = smul.addr %s508, 8
          %s510 = scalar_lea.vmem %s8, %s509
          %s511 = sadd.s32 %s28, %s29
          %s512 = smul.u32 2, %s511
        $region52: #{_compute_stats.1} parent=15 // pred_fallthru
          _
        // Predicated region
        $region53: #{_compute_stats.1} parent=15 // pred_check
          %p513 = pneg %p307
        $region54: #{_compute_stats.1} parent=15 // pred_check_branch
          %515 = sbr.rel (%p513) target = $region56
        $region55: #{_compute_stats.1} parent=15 // pred_region
          %s516 = sadd.s32 %s28, %s29
          %s517 = smul.u32 2, %s516
          %p518 = scmp.lt.s32.totalorder %s517, 3
          %s519 = scalar_select %p518, %s517, 3
          %s520 = smul.addr %s519, 8
          %s521 = scalar_lea.vmem %s9, %s520
          %s522 = sadd.s32 %s28, %s29
          %s523 = smul.u32 2, %s522
        $region56: #{_compute_stats.1} parent=15 // pred_fallthru
          _
        // Predicated region
        $region57: #{_compute_stats.1} parent=15 // pred_check
          %p524 = pneg %p335
        $region58: #{_compute_stats.1} parent=15 // pred_check_branch
          %526 = sbr.rel (%p524) target = $region60
        $region59: #{_compute_stats.1} parent=15 // pred_region
          %s527 = sadd.s32 %s28, %s29
          %s528 = smul.u32 2, %s527
          %p529 = scmp.lt.s32.totalorder %s528, 3
          %s530 = scalar_select %p529, %s528, 3
          %s531 = smul.addr %s530, 8
          %s532 = scalar_lea.vmem %s10, %s531
          %s533 = sadd.s32 %s28, %s29
          %s534 = smul.u32 2, %s533
        $region60: #{_compute_stats.1} parent=15 // pred_fallthru
          _
        // Predicated region
        $region61: #{_compute_stats.1} parent=15 // pred_check
          %p535 = pneg %p363
        $region62: #{_compute_stats.1} parent=15 // pred_check_branch
          %537 = sbr.rel (%p535) target = $region64
        $region63: #{_compute_stats.1} parent=15 // pred_region
          %s538 = sadd.s32 %s28, %s29
          %s539 = smul.u32 2, %s538
          %p540 = scmp.lt.s32.totalorder %s539, 3
          %s541 = scalar_select %p540, %s539, 3
          %s542 = smul.addr %s541, 8
          %s543 = scalar_lea.vmem %s11, %s542
          %s544 = sadd.s32 %s28, %s29
          %s545 = smul.u32 2, %s544
        $region64: #{_compute_stats.1} parent=15 // pred_fallthru
          _
      $region16: #{_compute_stats.1} parent=5 // pred_fallthru
        _
      %p546 = scmp.le.s32.totalorder 1, %s21
      %p547 = scmp.lt.s32.totalorder %s21, 3
      %p548 = pnand %p546, %p547
      %p549 = pneg %p548
      // Predicated region
      $region65: #{_compute_stats.1} parent=5 // pred_check
        _
      $region66: #{_compute_stats.1} parent=5 // pred_check_branch
        %551 = sbr.rel (%p548) target = $region68
      $region67: #{_compute_stats.1} parent=5 // pred_region
        %s552 = ssub.s32 %s21, 1
        %s553 = sadd.s32 %s30, %s31
        %s554 = smul.u32 2, %s553
        %p555 = scmp.lt.s32.totalorder %s554, 3
        %s556 = scalar_select %p555, %s554, 3
        %s557 = smul.addr %s556, 8
        %s558 = scalar_lea.vmem %s0, %s557
        %p559 = pneg %p61
        %p560 = pneg %p58
        %s561 = sadd.s32 %s30, %s31
        %s562 = smul.u32 2, %s561
        %p563 = scmp.lt.s32.totalorder %s562, 3
        %s564 = scalar_select %p563, %s562, 3
        %s565 = smul.addr %s564, 8
        %s566 = scalar_lea.vmem %s1, %s565
        %p567 = pneg %p89
        %p568 = pneg %p86
        %s569 = sadd.s32 %s30, %s31
        %s570 = smul.u32 2, %s569
        %p571 = scmp.lt.s32.totalorder %s570, 3
        %s572 = scalar_select %p571, %s570, 3
        %s573 = smul.addr %s572, 8
        %s574 = scalar_lea.vmem %s2, %s573
        %p575 = pneg %p117
        %p576 = pneg %p114
        %s577 = sadd.s32 %s30, %s31
        %s578 = smul.u32 2, %s577
        %p579 = scmp.lt.s32.totalorder %s578, 3
        %s580 = scalar_select %p579, %s578, 3
        %s581 = smul.addr %s580, 8
        %s582 = scalar_lea.vmem %s3, %s581
        %p583 = pneg %p145
        %p584 = pneg %p142
        %s585 = sadd.s32 %s30, %s31
        %s586 = smul.u32 2, %s585
        %p587 = scmp.lt.s32.totalorder %s586, 3
        %s588 = scalar_select %p587, %s586, 3
        %s589 = smul.addr %s588, 8
        %s590 = scalar_lea.vmem %s4, %s589
        %p591 = pneg %p173
        %p592 = pneg %p170
        %s593 = sadd.s32 %s30, %s31
        %s594 = smul.u32 2, %s593
        %p595 = scmp.lt.s32.totalorder %s594, 3
        %s596 = scalar_select %p595, %s594, 3
        %s597 = smul.addr %s596, 8
        %s598 = scalar_lea.vmem %s5, %s597
        %p599 = pneg %p201
        %p600 = pneg %p198
        %s601 = sadd.s32 %s30, %s31
        %s602 = smul.u32 2, %s601
        %p603 = scmp.lt.s32.totalorder %s602, 3
        %s604 = scalar_select %p603, %s602, 3
        %s605 = smul.addr %s604, 8
        %s606 = scalar_lea.vmem %s6, %s605
        %p607 = pneg %p229
        %p608 = pneg %p226
        %s609 = sadd.s32 %s30, %s31
        %s610 = smul.u32 2, %s609
        %p611 = scmp.lt.s32.totalorder %s610, 3
        %s612 = scalar_select %p611, %s610, 3
        %s613 = smul.addr %s612, 8
        %s614 = scalar_lea.vmem %s7, %s613
        %p615 = pneg %p257
        %p616 = pneg %p254
        %s617 = sadd.s32 %s30, %s31
        %s618 = smul.u32 2, %s617
        %p619 = scmp.lt.s32.totalorder %s618, 3
        %s620 = scalar_select %p619, %s618, 3
        %s621 = smul.addr %s620, 8
        %s622 = scalar_lea.vmem %s8, %s621
        %p623 = pneg %p285
        %p624 = pneg %p282
        %s625 = sadd.s32 %s30, %s31
        %s626 = smul.u32 2, %s625
        %p627 = scmp.lt.s32.totalorder %s626, 3
        %s628 = scalar_select %p627, %s626, 3
        %s629 = smul.addr %s628, 8
        %s630 = scalar_lea.vmem %s9, %s629
        %p631 = pneg %p313
        %p632 = pneg %p310
        %s633 = sadd.s32 %s30, %s31
        %s634 = smul.u32 2, %s633
        %p635 = scmp.lt.s32.totalorder %s634, 3
        %s636 = scalar_select %p635, %s634, 3
        %s637 = smul.addr %s636, 8
        %s638 = scalar_lea.vmem %s10, %s637
        %p639 = pneg %p341
        %p640 = pneg %p338
        %s641 = sadd.s32 %s30, %s31
        %s642 = smul.u32 2, %s641
        %p643 = scmp.lt.s32.totalorder %s642, 3
        %s644 = scalar_select %p643, %s642, 3
        %s645 = smul.addr %s644, 8
        %s646 = scalar_lea.vmem %s11, %s645
        %p647 = pneg %p369
        %p648 = pneg %p366
        %p649 = pneg %p395
        %p650 = pneg %p392
        %s651 = sand.u32 %s382, 1
        %s652 = scalar_lea.sflag [#allocation3], %s651
        %s653 = sand.u32 %s382, 1
        %s654 = smul.addr %s653, 216
        %s655 = scalar_lea.vmem [#allocation2], %s654
        %s656 = sadd.s32 %s30, %s31
        %s657 = smul.u32 2, %s656
        %p658 = scmp.lt.s32.totalorder %s657, 3
        %s659 = scalar_select %p658, %s657, 3
        %s660 = smul.addr %s659, 8
        %s661 = scalar_lea.vmem %s0, %s660
        %s662 = sadd.s32 %s30, %s31
        %s663 = smul.u32 2, %s662
        %s664 = sadd.s32 %s30, %s31
        %s665 = smul.u32 2, %s664
        %p666 = scmp.lt.s32.totalorder %s665, 3
        %s667 = scalar_select %p666, %s665, 3
        %s668 = smul.addr %s667, 8
        %s669 = scalar_lea.vmem %s1, %s668
        %s670 = sadd.s32 %s30, %s31
        %s671 = smul.u32 2, %s670
        %s672 = sadd.s32 %s30, %s31
        %s673 = smul.u32 2, %s672
        %p674 = scmp.lt.s32.totalorder %s673, 3
        %s675 = scalar_select %p674, %s673, 3
        %s676 = smul.addr %s675, 8
        %s677 = scalar_lea.vmem %s2, %s676
        %s678 = sadd.s32 %s30, %s31
        %s679 = smul.u32 2, %s678
        %s680 = sadd.s32 %s30, %s31
        %s681 = smul.u32 2, %s680
        %p682 = scmp.lt.s32.totalorder %s681, 3
        %s683 = scalar_select %p682, %s681, 3
        %s684 = smul.addr %s683, 8
        %s685 = scalar_lea.vmem %s3, %s684
        %s686 = sadd.s32 %s30, %s31
        %s687 = smul.u32 2, %s686
        %s688 = sadd.s32 %s30, %s31
        %s689 = smul.u32 2, %s688
        %p690 = scmp.lt.s32.totalorder %s689, 3
        %s691 = scalar_select %p690, %s689, 3
        %s692 = smul.addr %s691, 8
        %s693 = scalar_lea.vmem %s4, %s692
        %s694 = sadd.s32 %s30, %s31
        %s695 = smul.u32 2, %s694
        %s696 = sadd.s32 %s30, %s31
        %s697 = smul.u32 2, %s696
        %p698 = scmp.lt.s32.totalorder %s697, 3
        %s699 = scalar_select %p698, %s697, 3
        %s700 = smul.addr %s699, 8
        %s701 = scalar_lea.vmem %s5, %s700
        %s702 = sadd.s32 %s30, %s31
        %s703 = smul.u32 2, %s702
        %s704 = sadd.s32 %s30, %s31
        %s705 = smul.u32 2, %s704
        %p706 = scmp.lt.s32.totalorder %s705, 3
        %s707 = scalar_select %p706, %s705, 3
        %s708 = smul.addr %s707, 8
        %s709 = scalar_lea.vmem %s6, %s708
        %s710 = sadd.s32 %s30, %s31
        %s711 = smul.u32 2, %s710
        %s712 = sadd.s32 %s30, %s31
        %s713 = smul.u32 2, %s712
        %p714 = scmp.lt.s32.totalorder %s713, 3
        %s715 = scalar_select %p714, %s713, 3
        %s716 = smul.addr %s715, 8
        %s717 = scalar_lea.vmem %s7, %s716
        %s718 = sadd.s32 %s30, %s31
        %s719 = smul.u32 2, %s718
        %s720 = sadd.s32 %s30, %s31
        %s721 = smul.u32 2, %s720
        %p722 = scmp.lt.s32.totalorder %s721, 3
        %s723 = scalar_select %p722, %s721, 3
        %s724 = smul.addr %s723, 8
        %s725 = scalar_lea.vmem %s8, %s724
        %s726 = sadd.s32 %s30, %s31
        %s727 = smul.u32 2, %s726
        %s728 = sadd.s32 %s30, %s31
        %s729 = smul.u32 2, %s728
        %p730 = scmp.lt.s32.totalorder %s729, 3
        %s731 = scalar_select %p730, %s729, 3
        %s732 = smul.addr %s731, 8
        %s733 = scalar_lea.vmem %s9, %s732
        %s734 = sadd.s32 %s30, %s31
        %s735 = smul.u32 2, %s734
        %s736 = sadd.s32 %s30, %s31
        %s737 = smul.u32 2, %s736
        %p738 = scmp.lt.s32.totalorder %s737, 3
        %s739 = scalar_select %p738, %s737, 3
        %s740 = smul.addr %s739, 8
        %s741 = scalar_lea.vmem %s10, %s740
        %s742 = sadd.s32 %s30, %s31
        %s743 = smul.u32 2, %s742
        %s744 = sadd.s32 %s30, %s31
        %s745 = smul.u32 2, %s744
        %p746 = scmp.lt.s32.totalorder %s745, 3
        %s747 = scalar_select %p746, %s745, 3
        %s748 = smul.addr %s747, 8
        %s749 = scalar_lea.vmem %s11, %s748
        %s750 = sadd.s32 %s30, %s31
        %s751 = smul.u32 2, %s750
        %p752 = scmp.eq.s32.totalorder %s31, 0
        // Predicated region
        $region69: #{_compute_stats.1} parent=67 // pred_check
          %p753 = pneg %p752
        $region70: #{_compute_stats.1} parent=67 // pred_check_branch
          %755 = sbr.rel (%p753) target = $region72
        $region71: #{_compute_stats.1} parent=67 // pred_region
          %756 = vst [vmem:[%s655] sm:$0xff] 0.0
          %757 = vst [vmem:[%s655 + $0x8] sm:$0xff] 0.0
          %758 = vst [vmem:[%s655 + $0x10] sm:$0xff] 0.0
          %759 = vst [vmem:[%s655 + $0x18] sm:$0xff] 0.0
          %760 = vst [vmem:[%s655 + $0x20] sm:$0xff] 0.0
          %761 = vst [vmem:[%s655 + $0x28] sm:$0xff] 0.0
          %762 = vst [vmem:[%s655 + $0x30] sm:$0xff] 0.0
          %763 = vst [vmem:[%s655 + $0x38] sm:$0xff] 0.0
          %764 = vst [vmem:[%s655 + $0x40] sm:$0xff] 0.0
          %765 = vst [vmem:[%s655 + $0x48] sm:$0xff] 0.0
          %766 = vst [vmem:[%s655 + $0x50] sm:$0xff] 0.0
          %767 = vst [vmem:[%s655 + $0x58] sm:$0xff] 0.0
          %768 = vst [vmem:[%s655 + $0x60] sm:$0xff] 0.0
          %769 = vst [vmem:[%s655 + $0x68] sm:$0xff] 0.0
          %770 = vst [vmem:[%s655 + $0x70] sm:$0xff] 0.0
          %771 = vst [vmem:[%s655 + $0x78] sm:$0xff] 0.0
          %772 = vst [vmem:[%s655 + $0x80] sm:$0xff] 0.0
          %773 = vst [vmem:[%s655 + $0x88] sm:$0xff] 0.0
          %774 = vst [vmem:[%s655 + $0x90] sm:$0xff] 0.0
          %775 = vst [vmem:[%s655 + $0x98] sm:$0xff] 0.0
          %776 = vst [vmem:[%s655 + $0xa0] sm:$0xff] 0.0
          %777 = vst [vmem:[%s655 + $0xa8] sm:$0xff] 0.0
          %778 = vst [vmem:[%s655 + $0xb0] sm:$0xff] 0.0
          %779 = vst [vmem:[%s655 + $0xb8] sm:$0xff] 0.0
          %780 = vst [vmem:[%s655 + $0xc0] sm:$0xff] 0.0
          %781 = vst [vmem:[%s655 + $0xc8] sm:$0xff] 0.0
          %782 = vst [vmem:[%s655 + $0xd0] sm:$0xff] 0.0
        $region72: #{_compute_stats.1} parent=67 // pred_fallthru
          _
        loop: start=0, step=1, limit=2
        $region73: #{_compute_stats.1} parent=67 // loop_pre_header
          _
        $region74: #{_compute_stats.1} parent=67 // loop_header
          %s784 = sphi 0, %s788
          %p785 = scmp.ge.s32.totalorder %s784, 2
          %v789 = vphi 0.0, %v954
          %v790 = vphi 0.0, %v955
          %v791 = vphi 0.0, %v956
          %v792 = vphi 0.0, %v957
          %v793 = vphi 0.0, %v958
          %v794 = vphi 0.0, %v959
          %v795 = vphi 0.0, %v960
          %v796 = vphi 0.0, %v961
          %v797 = vphi 0.0, %v962
          %v798 = vphi 0.0, %v963
          %v799 = vphi 0.0, %v964
          %v800 = vphi 0.0, %v965
          %v801 = vphi 0.0, %v966
          %v802 = vphi 0.0, %v967
          %v803 = vphi 0.0, %v968
          %v804 = vphi 0.0, %v969
          %v805 = vphi 0.0, %v970
          %v806 = vphi 0.0, %v971
          %v807 = vphi 0.0, %v972
          %v808 = vphi 0.0, %v973
          %v809 = vphi 0.0, %v974
          %v810 = vphi 0.0, %v975
          %v811 = vphi 0.0, %v976
          %v812 = vphi 0.0, %v977
          %v813 = vphi 0.0, %v978
          %v814 = vphi 0.0, %v979
          %v815 = vphi 0.0, %v980
        $region75: #{_compute_stats.1} parent=67 // loop_header_branch
          %787 = sbr.rel (%p785) target = $region79
        $region76: #{_compute_stats.1} parent=67 // loop_body
          %s816 = smul.u32 %s784, 8
          %s817 = scalar_lea.vmem %s661, %s816
          %v818 = vld [vmem:[%s817] sm:$0xff]
          %s819 = scalar_lea.vmem %s669, %s816
          %v820 = vld [vmem:[%s819] sm:$0xff]
          %s821 = scalar_lea.vmem %s677, %s816
          %v822 = vld [vmem:[%s821] sm:$0xff]
          %s823 = scalar_lea.vmem %s685, %s816
          %v824 = vld [vmem:[%s823] sm:$0xff]
          %s825 = scalar_lea.vmem %s693, %s816
          %v826 = vld [vmem:[%s825] sm:$0xff]
          %s827 = scalar_lea.vmem %s701, %s816
          %v828 = vld [vmem:[%s827] sm:$0xff]
          %s829 = scalar_lea.vmem %s709, %s816
          %v830 = vld [vmem:[%s829] sm:$0xff]
          %s831 = scalar_lea.vmem %s717, %s816
          %v832 = vld [vmem:[%s831] sm:$0xff]
          %s833 = scalar_lea.vmem %s725, %s816
          %v834 = vld [vmem:[%s833] sm:$0xff]
          %s835 = scalar_lea.vmem %s733, %s816
          %v836 = vld [vmem:[%s835] sm:$0xff]
          %s837 = scalar_lea.vmem %s741, %s816
          %v838 = vld [vmem:[%s837] sm:$0xff]
          %s839 = scalar_lea.vmem %s749, %s816
          %v840 = vld [vmem:[%s839] sm:$0xff]
          %vm841 = vcmp.gt.f32.partialorder %v820, 0.5
          %vm842 = vcmp.gt.f32.partialorder %v830, 0.5
          %vm843 = vcmp.gt.f32.partialorder %v818, 0.0
          %vm844 = vcmp.gt.f32.partialorder %v828, 0.0
          %v845 = vsel %vm844, 1, 0
          %v846 = vcvt.s32.f32 %v845
          %v847 = vsel %vm843, 1, 0
          %v848 = vcvt.s32.f32 %v847
          %v849 = vsel %vm841, 1, 0
          %v850 = vcvt.s32.f32 %v849
          %v851 = vadd.f32 %v822, 1e-06
          %v852 = vlog2.pop %v851
          %v853 = vmul.f32 %v852, 0.6931472
          %v854 = vsub.f32 0.0, %v853
          %v855 = vsub.f32 %v824, %v818
          %v856 = vand.u32 2147483647, %v855
          %vm857 = vcmp.lt.f32.partialorder %v856, 1.0
          %v858 = vmul.f32 %v855, 0.5
          %v859 = vmul.f32 %v858, %v855
          %v860 = vsub.f32 %v856, 0.5
          %v861 = vsel %vm857, %v859, %v860
          %v862 = vadd.f32 %v826, 1e-06
          %v863 = vlog2.pop %v862
          %v864 = vmul.f32 %v863, 0.6931472
          %v865 = vsub.f32 0.0, %v864
          %v866 = vsub.f32 1.0, %v826
          %v867 = vadd.f32 %v866, 1e-06
          %v868 = vlog2.pop %v867
          %v869 = vmul.f32 %v868, 0.6931472
          %v870 = vsub.f32 0.0, %v869
          %vm871 = vcmp.gt.f32.partialorder %v826, 0.5
          %v872 = vmul.f32 %v848, %v854
          %v873 = vmul.f32 %v848, %v861
          %v874 = vmul.f32 %v850, %v865
          %v875 = vmul.f32 %v848, %v870
          %vm876 = vcmp.gt.f32.partialorder %v856, 3.0
          %v877 = vsel %vm876, 1, 0
          %v878 = vcvt.s32.f32 %v877
          %v879 = vmul.f32 %v846, %v878
          %v880 = vmul.f32 %v846, %v856
          %vm881 = vmand %vm871, %vm841
          %v882 = vsel %vm881, 1, 0
          %v883 = vcvt.s32.f32 %v882
          %vm884 = vmand %vm871, %vm844
          %vm885 = vmor %vm884, %vm841
          %v886 = vsel %vm885, 1, 0
          %v887 = vcvt.s32.f32 %v886
          %vm888 = vmxor %vm871, 1
          %vm889 = vmand %vm888, %vm844
          %v890 = vsel %vm889, 1, 0
          %v891 = vcvt.s32.f32 %v890
          %vm892 = vmand %vm888, %vm841
          %vm893 = vmor %vm892, %vm844
          %v894 = vsel %vm893, 1, 0
          %v895 = vcvt.s32.f32 %v894
          %v896 = vsel %vm842, 1, 0
          %v897 = vcvt.s32.f32 %v896
          %v898 = vadd.f32 %v832, 1e-06
          %v899 = vlog2.pop %v898
          %v900 = vmul.f32 %v899, 0.6931472
          %v901 = vsub.f32 0.0, %v900
          %v902 = vsub.f32 %v834, %v828
          %v903 = vand.u32 2147483647, %v902
          %vm904 = vcmp.lt.f32.partialorder %v903, 1.0
          %v905 = vmul.f32 %v902, 0.5
          %v906 = vmul.f32 %v905, %v902
          %v907 = vsub.f32 %v903, 0.5
          %v908 = vsel %vm904, %v906, %v907
          %v909 = vadd.f32 %v836, 1e-06
          %v910 = vlog2.pop %v909
          %v911 = vmul.f32 %v910, 0.6931472
          %v912 = vsub.f32 0.0, %v911
          %v913 = vsub.f32 1.0, %v836
          %v914 = vadd.f32 %v913, 1e-06
          %v915 = vlog2.pop %v914
          %v916 = vmul.f32 %v915, 0.6931472
          %v917 = vsub.f32 0.0, %v916
          %vm918 = vcmp.gt.f32.partialorder %v836, 0.5
          %v919 = vmul.f32 %v846, %v901
          %v920 = vmul.f32 %v846, %v908
          %v921 = vmul.f32 %v897, %v912
          %v922 = vmul.f32 %v846, %v917
          %vm923 = vcmp.gt.f32.partialorder %v903, 3.0
          %v924 = vsel %vm923, 1, 0
          %v925 = vcvt.s32.f32 %v924
          %v926 = vmul.f32 %v846, %v925
          %v927 = vmul.f32 %v846, %v903
          %vm928 = vmand %vm918, %vm842
          %v929 = vsel %vm928, 1, 0
          %v930 = vcvt.s32.f32 %v929
          %vm931 = vmand %vm918, %vm844
          %vm932 = vmor %vm931, %vm842
          %v933 = vsel %vm932, 1, 0
          %v934 = vcvt.s32.f32 %v933
          %vm935 = vmxor %vm918, 1
          %vm936 = vmand %vm935, %vm844
          %v937 = vsel %vm936, 1, 0
          %v938 = vcvt.s32.f32 %v937
          %vm939 = vmand %vm935, %vm842
          %vm940 = vmor %vm939, %vm844
          %v941 = vsel %vm940, 1, 0
          %v942 = vcvt.s32.f32 %v941
          %v943 = vsub.f32 %v838, %v840
          %v944 = vand.u32 2147483647, %v943
          %vm945 = vcmp.gt.f32.partialorder %v944, 3.0
          %v946 = vsel %vm945, 1, 0
          %v947 = vcvt.s32.f32 %v946
          %v948 = vmul.f32 %v846, %v947
          %vm949 = vcmp.lt.f32.partialorder %v944, 1.0
          %v950 = vmul.f32 %v943, 0.5
          %v951 = vmul.f32 %v950, %v943
          %v952 = vsub.f32 %v944, 0.5
          %v953 = vsel %vm949, %v951, %v952
          %v954 = vadd.f32 %v789, %v872
          %v955 = vadd.f32 %v790, %v848
          %v956 = vadd.f32 %v791, %v873
          %v957 = vadd.f32 %v792, %v874
          %v958 = vadd.f32 %v793, %v850
          %v959 = vadd.f32 %v794, %v875
          %v960 = vadd.f32 %v795, %v879
          %v961 = vadd.f32 %v796, %v880
          %v962 = vadd.f32 %v797, %v883
          %v963 = vadd.f32 %v798, %v887
          %v964 = vadd.f32 %v799, %v891
          %v965 = vadd.f32 %v800, %v895
          %v966 = vadd.f32 %v801, %v919
          %v967 = vadd.f32 %v802, %v846
          %v968 = vadd.f32 %v803, %v920
          %v969 = vadd.f32 %v804, %v921
          %v970 = vadd.f32 %v805, %v897
          %v971 = vadd.f32 %v806, %v922
          %v972 = vadd.f32 %v807, %v926
          %v973 = vadd.f32 %v808, %v927
          %v974 = vadd.f32 %v809, %v930
          %v975 = vadd.f32 %v810, %v934
          %v976 = vadd.f32 %v811, %v938
          %v977 = vadd.f32 %v812, %v942
          %v978 = vadd.f32 %v813, %v948
          %v979 = vadd.f32 %v814, %v944
          %v980 = vadd.f32 %v815, %v953
        $region77: #{_compute_stats.1} parent=67 // loop_footer
          %s788 = sadd.s32 1, %s784
        $region78: #{_compute_stats.1} parent=67 // loop_footer_branch
          %783 = sbr.rel target = $region74
        $region79: #{_compute_stats.1} parent=67 // loop_exit
          _
        %v981 = vld [vmem:[%s655] sm:$0xff]
        %v982 = vld [vmem:[%s655 + $0x8] sm:$0xff]
        %v983 = vld [vmem:[%s655 + $0x10] sm:$0xff]
        %v984 = vld [vmem:[%s655 + $0x18] sm:$0xff]
        %v985 = vld [vmem:[%s655 + $0x20] sm:$0xff]
        %v986 = vld [vmem:[%s655 + $0x28] sm:$0xff]
        %v987 = vld [vmem:[%s655 + $0x30] sm:$0xff]
        %v988 = vld [vmem:[%s655 + $0x38] sm:$0xff]
        %v989 = vld [vmem:[%s655 + $0x40] sm:$0xff]
        %v990 = vld [vmem:[%s655 + $0x48] sm:$0xff]
        %v991 = vld [vmem:[%s655 + $0x50] sm:$0xff]
        %v992 = vld [vmem:[%s655 + $0x58] sm:$0xff]
        %v993 = vld [vmem:[%s655 + $0x60] sm:$0xff]
        %v994 = vld [vmem:[%s655 + $0x68] sm:$0xff]
        %v995 = vld [vmem:[%s655 + $0x70] sm:$0xff]
        %v996 = vld [vmem:[%s655 + $0x78] sm:$0xff]
        %v997 = vld [vmem:[%s655 + $0x80] sm:$0xff]
        %v998 = vld [vmem:[%s655 + $0x88] sm:$0xff]
        %v999 = vld [vmem:[%s655 + $0x90] sm:$0xff]
        %v1000 = vld [vmem:[%s655 + $0x98] sm:$0xff]
        %v1001 = vld [vmem:[%s655 + $0xa0] sm:$0xff]
        %v1002 = vld [vmem:[%s655 + $0xa8] sm:$0xff]
        %v1003 = vld [vmem:[%s655 + $0xb0] sm:$0xff]
        %v1004 = vld [vmem:[%s655 + $0xb8] sm:$0xff]
        %v1005 = vld [vmem:[%s655 + $0xc0] sm:$0xff]
        %v1006 = vld [vmem:[%s655 + $0xc8] sm:$0xff]
        %v1007 = vld [vmem:[%s655 + $0xd0] sm:$0xff]
        %v1008 = vadd.f32 %v981, %v789
        %v1009 = vadd.f32 %v982, %v790
        %v1010 = vadd.f32 %v983, %v791
        %v1011 = vadd.f32 %v984, %v792
        %v1012 = vadd.f32 %v985, %v793
        %v1013 = vadd.f32 %v986, %v794
        %v1014 = vadd.f32 %v987, %v795
        %v1015 = vadd.f32 %v988, %v796
        %v1016 = vadd.f32 %v989, %v797
        %v1017 = vadd.f32 %v990, %v798
        %v1018 = vadd.f32 %v991, %v799
        %v1019 = vadd.f32 %v992, %v800
        %v1020 = vadd.f32 %v993, %v801
        %v1021 = vadd.f32 %v994, %v802
        %v1022 = vadd.f32 %v995, %v803
        %v1023 = vadd.f32 %v996, %v804
        %v1024 = vadd.f32 %v997, %v805
        %v1025 = vadd.f32 %v998, %v806
        %v1026 = vadd.f32 %v999, %v807
        %v1027 = vadd.f32 %v1000, %v808
        %v1028 = vadd.f32 %v1001, %v809
        %v1029 = vadd.f32 %v1002, %v810
        %v1030 = vadd.f32 %v1003, %v811
        %v1031 = vadd.f32 %v1004, %v812
        %v1032 = vadd.f32 %v1005, %v813
        %v1033 = vadd.f32 %v1006, %v814
        %v1034 = vadd.f32 %v1007, %v815
        %1035 = vst [vmem:[%s655] sm:$0xff] %v1008
        %1036 = vst [vmem:[%s655 + $0x8] sm:$0xff] %v1009
        %1037 = vst [vmem:[%s655 + $0x10] sm:$0xff] %v1010
        %1038 = vst [vmem:[%s655 + $0x18] sm:$0xff] %v1011
        %1039 = vst [vmem:[%s655 + $0x20] sm:$0xff] %v1012
        %1040 = vst [vmem:[%s655 + $0x28] sm:$0xff] %v1013
        %1041 = vst [vmem:[%s655 + $0x30] sm:$0xff] %v1014
        %1042 = vst [vmem:[%s655 + $0x38] sm:$0xff] %v1015
        %1043 = vst [vmem:[%s655 + $0x40] sm:$0xff] %v1016
        %1044 = vst [vmem:[%s655 + $0x48] sm:$0xff] %v1017
        %1045 = vst [vmem:[%s655 + $0x50] sm:$0xff] %v1018
        %1046 = vst [vmem:[%s655 + $0x58] sm:$0xff] %v1019
        %1047 = vst [vmem:[%s655 + $0x60] sm:$0xff] %v1020
        %1048 = vst [vmem:[%s655 + $0x68] sm:$0xff] %v1021
        %1049 = vst [vmem:[%s655 + $0x70] sm:$0xff] %v1022
        %1050 = vst [vmem:[%s655 + $0x78] sm:$0xff] %v1023
        %1051 = vst [vmem:[%s655 + $0x80] sm:$0xff] %v1024
        %1052 = vst [vmem:[%s655 + $0x88] sm:$0xff] %v1025
        %1053 = vst [vmem:[%s655 + $0x90] sm:$0xff] %v1026
        %1054 = vst [vmem:[%s655 + $0x98] sm:$0xff] %v1027
        %1055 = vst [vmem:[%s655 + $0xa0] sm:$0xff] %v1028
        %1056 = vst [vmem:[%s655 + $0xa8] sm:$0xff] %v1029
        %1057 = vst [vmem:[%s655 + $0xb0] sm:$0xff] %v1030
        %1058 = vst [vmem:[%s655 + $0xb8] sm:$0xff] %v1031
        %1059 = vst [vmem:[%s655 + $0xc0] sm:$0xff] %v1032
        %1060 = vst [vmem:[%s655 + $0xc8] sm:$0xff] %v1033
        %1061 = vst [vmem:[%s655 + $0xd0] sm:$0xff] %v1034
        %s1062 = sand.u32 %s382, 1
        %s1063 = scalar_lea.sflag [#allocation3], %s1062
        %s1064 = sand.u32 %s382, 1
        %s1065 = smul.addr %s1064, 216
        %s1066 = scalar_lea.vmem [#allocation2], %s1065
        // Predicated region
        $region80: #{_compute_stats.1} parent=67 // pred_check
          %p1067 = pneg %p392
        $region81: #{_compute_stats.1} parent=67 // pred_check_branch
          %1069 = sbr.rel (%p1067) target = $region83
        $region82: #{_compute_stats.1} parent=67 // pred_region
          %s1071 = ssub.s32 3456, 3456
          %1072 = vsyncadd %s1063, %s1071
          %s1073 = smul.addr %s30, 27
          %s1074 = smul.addr %s1073, 128
          %s1075 = scalar_lea.hbm %s12, %s1074
          %s1076 = sshll.u32 %s1066, 4
          %s1077 = int_to_ptr.vmem [resolvable:$true] %s1076
          %1082 = dma.vmem_to_hbm [thread:$0]  %s1077, 3456, %s1075, %s1063, 128, 128, 8
        $region83: #{_compute_stats.1} parent=67 // pred_fallthru
          _
      $region68: #{_compute_stats.1} parent=5 // pred_fallthru
        _
      %p1083 = scmp.le.s32.totalorder 2, %s21
      // Predicated region
      $region84: #{_compute_stats.1} parent=5 // pred_check
        %p1084 = pneg %p1083
      $region85: #{_compute_stats.1} parent=5 // pred_check_branch
        %1086 = sbr.rel (%p1084) target = $region87
      $region86: #{_compute_stats.1} parent=5 // pred_region
        %s1087 = ssub.s32 %s21, 2
        // Predicated region
        $region88: #{_compute_stats.1} parent=86 // pred_check
          %p1088 = pneg %p398
        $region89: #{_compute_stats.1} parent=86 // pred_check_branch
          %1090 = sbr.rel (%p1088) target = $region91
        $region90: #{_compute_stats.1} parent=86 // pred_region
          %s1091 = sand.u32 %s383, 1
          %s1092 = scalar_lea.sflag [#allocation3], %s1091
          %s1093 = sand.u32 %s383, 1
          %s1094 = smul.addr %s1093, 216
          %s1095 = scalar_lea.vmem [#allocation2], %s1094
          %1096 = dma.done %s1092, 3456
        $region91: #{_compute_stats.1} parent=86 // pred_fallthru
          _
      $region87: #{_compute_stats.1} parent=5 // pred_fallthru
        _
    $region6: #{_compute_stats.1} parent=1 // loop_footer
      %s25 = sadd.s32 1, %s21
    $region7: #{_compute_stats.1} parent=1 // loop_footer_branch
      %20 = sbr.rel target = $region3
    $region8: #{_compute_stats.1} parent=1 // loop_exit
      _
    %1097 = vsyncpa [#allocation3], 1
    %s1098 = scalar_lea.sflag [#allocation3], 1
    %1099 = vsyncpa %s1098, 1

</llo_original>
